<compile_context>
chip_gen: v5e
topology: v5e:2x2
jax: 0.10.0
libtpu: 0.0.40
codegen_flags: <defaults>
</compile_context>

<pallas_src>
import jax
import jax.numpy as jnp
from jax.experimental import pallas as pl
from jax.experimental.pallas import tpu as pltpu

BN_EPS = 1e-5          # PyTorch nn.BatchNorm2d default
GRN_EPS = 1e-6         # from the GRN module

_LPAD = 8              # sublane-aligned left pad of the depthwise scratch


def _vmem_limit_bytes():
    """Generation-aware scoped-VMEM limit (v5e/v6e: 128 MiB phys, v7x: 64 MiB)."""
    cap = 64 * 1024 * 1024
    try:
        cap = int(pltpu.get_tpu_info().vmem_capacity_bytes)
    except Exception:
        pass
    return max(32 * 1024 * 1024, min((cap * 3) // 4, 96 * 1024 * 1024))


# ---------------------------------------------------------------------------
# Pass A: y = x + dw3x3(pw1x1(x)), plus per-channel BN sum / sum-of-squares.
# Input/output blocks are NCHW (1, C, HW); channels-last only inside the kernel.
# ---------------------------------------------------------------------------
def _bsconv_residual_kernel(x_ref, pw_ref, dww_ref, dwb_ref,
                            y_ref, sum_ref, sq_ref, pad_ref):
    b = pl.program_id(0)
    C, HW = x_ref.shape[1], x_ref.shape[2]
    H = pad_ref.shape[0] - 2
    W = pad_ref.shape[1] - 2 * _LPAD

    # NCHW block -> channels-last, in-kernel (XLU transpose; no wrapper transpose).
    xf = x_ref[0].T                                                # (HW, C) f32

    # 1x1 pointwise conv (bias-free) == per-pixel channel matmul on the MXU.
    p = jnp.dot(xf, pw_ref[...], preferred_element_type=jnp.float32)   # (HW, C)

    # Zero the padded spatial scratch once; the zero border persists across
    # grid iterations (interior is overwritten each step).
    @pl.when(b == 0)
    def _zero_pad():
        pad_ref[...] = jnp.zeros_like(pad_ref)

    # Fully aligned interior store: leading offset 1 (H axis), sublane offset
    # _LPAD=8 (W axis), full lanes (C).
    pad_ref[1:H + 1, _LPAD:_LPAD + W, :] = p.reshape(H, W, C)

    # 3x3 depthwise conv (zero padding 1): three "tall" window loads, one per
    # kw at sublane offsets 7/8/9; kh row-slices are taken from the loaded
    # values (leading-dim slices of a value are free).  Only 2 of 3 loads are
    # sublane-unaligned.  Bias + residual are folded into the accumulator init.
    dww = dww_ref[...]                                             # (9, C) hoisted
    acc = xf.reshape(H, W, C) + dwb_ref[...]                       # residual + bias
    for kw in range(3):
        col = pad_ref[:, _LPAD - 1 + kw:_LPAD - 1 + kw + W, :]     # (H+2, W, C)
        for kh in range(3):
            t = 3 * kh + kw
            acc = acc + col[kh:kh + H] * dww[t:t + 1]

    y = acc.reshape(HW, C)                                         # (HW, C) f32

    # BatchNorm batch statistics, accumulated across the sequential batch axis.
    # The spatial reductions ride the (otherwise idle) MXU instead of the VALU.
    @pl.when(b == 0)
    def _init_stats():
        sum_ref[...] = jnp.zeros_like(sum_ref)
        sq_ref[...] = jnp.zeros_like(sq_ref)

    ones_row = jnp.ones((1, HW), jnp.float32)
    sum_ref[...] += jnp.dot(ones_row, y, preferred_element_type=jnp.float32)
    sq_ref[...] += jnp.dot(ones_row, y * y, preferred_element_type=jnp.float32)

    # Store y back in NCHW layout (lane-dense on HW) as bf16 (halves HBM bytes).
    y_ref[0] = y.T.astype(y_ref.dtype)


# ---------------------------------------------------------------------------
# Pass B: z = relu(y * scale + shift) (folded BN), then GRN.  Pure NCHW.
# ---------------------------------------------------------------------------
def _bn_relu_grn_kernel(y_ref, scale_ref, shift_ref, grn_ref, o_ref):
    yb = y_ref[0].astype(jnp.float32)                              # (C, HW) f32 math
    z = jnp.maximum(yb * scale_ref[...] + shift_ref[...], 0.0)

    # GRN (per batch element): gx_c = ||z[c, :]||_2 over the spatial axis.
    gx = jnp.sqrt(jnp.sum(z * z, axis=1, keepdims=True))           # (C, 1)
    nx = gx / (jnp.mean(gx, axis=0, keepdims=True) + GRN_EPS)      # (C, 1)

    g = grn_ref[0]   # scalar gamma (SMEM)
    be = grn_ref[1]  # scalar beta  (SMEM)
    o_ref[0] = (g * (z * nx) + be + z).astype(o_ref.dtype)


# ---------------------------------------------------------------------------
# Wrapper
# ---------------------------------------------------------------------------
def bsconv_layer_pallas(x, pw_w, dw_w, dw_b, bn_gamma, bn_beta,
                        grn_gamma, grn_beta):
    """Forward of BSConvLayer.

    x:        (B, C, H, W) float32, NCHW (PyTorch layout)
    pw_w:     (C, C, 1, 1) pointwise conv weight (out, in, 1, 1), no bias
    dw_w:     (C, 1, 3, 3) depthwise conv weight
    dw_b:     (C,)         depthwise conv bias
    bn_gamma, bn_beta: (C,) BatchNorm2d affine parameters
    grn_gamma, grn_beta: (1,) GRN scalar parameters
    """
    B, C, H, W = x.shape
    assert pw_w.shape[0] == pw_w.shape[1] == C, "residual add needs in_ch == out_ch"
    assert W % 8 == 0, "kernel assumes W is a multiple of the sublane tile (8)"
    HW = H * W

    # Contiguous reshape only; no layout transpose in the wrapper.
    x_flat = x.reshape(B, C, HW).astype(jnp.float32)

    pw_m = pw_w.reshape(C, C).T.astype(jnp.float32)        # (C_in, C_out)
    dw_m = dw_w.reshape(C, 9).T.astype(jnp.float32)        # (9, C), tap = 3*kh + kw
    dw_bias = dw_b.reshape(1, C).astype(jnp.float32)

    vmem_limit = _vmem_limit_bytes()

    # ---- Pass A: y = x + BSconv(x) (bf16 NCHW) and BN statistics -----------
    y_nchw, ch_sum, ch_sq = pl.pallas_call(
        _bsconv_residual_kernel,
        grid=(B,),
        in_specs=[
            pl.BlockSpec((1, C, HW), lambda b: (b, 0, 0)),
            pl.BlockSpec((C, C), lambda b: (0, 0)),
            pl.BlockSpec((9, C), lambda b: (0, 0)),
            pl.BlockSpec((1, C), lambda b: (0, 0)),
        ],
        out_specs=[
            pl.BlockSpec((1, C, HW), lambda b: (b, 0, 0)),
            pl.BlockSpec((1, C), lambda b: (0, 0)),        # accumulator (revisited)
            pl.BlockSpec((1, C), lambda b: (0, 0)),        # accumulator (revisited)
        ],
        out_shape=[
            jax.ShapeDtypeStruct((B, C, HW), jnp.bfloat16),
            jax.ShapeDtypeStruct((1, C), jnp.float32),
            jax.ShapeDtypeStruct((1, C), jnp.float32),
        ],
        scratch_shapes=[pltpu.VMEM((H + 2, W + 2 * _LPAD, C), jnp.float32)],
        compiler_params=pltpu.CompilerParams(
            dimension_semantics=("arbitrary",),            # stats accumulate over b
            vmem_limit_bytes=vmem_limit,
        ),
    )(x_flat, pw_m, dw_m, dw_bias)

    # ---- Fold BN (training-mode batch stats, biased var) into scale/shift --
    # NOTE: E[y^2]-E[y]^2 in f32 can lose precision for large-mean activations;
    # fine for this layer's zero-ish means (the max(...,0) clamp guards var<0).
    count = float(B * HW)
    mean = ch_sum / count                                   # (1, C)
    var = jnp.maximum(ch_sq / count - mean * mean, 0.0)     # biased variance
    inv = 1.0 / jnp.sqrt(var + BN_EPS)
    scale_row = bn_gamma.reshape(1, C).astype(jnp.float32) * inv
    shift_row = bn_beta.reshape(1, C).astype(jnp.float32) - mean * scale_row
    scale = scale_row.reshape(C, 1)                         # NCHW broadcast shape
    shift = shift_row.reshape(C, 1)

    grn_params = jnp.concatenate(
        [jnp.asarray(grn_gamma, jnp.float32).reshape(1),
         jnp.asarray(grn_beta, jnp.float32).reshape(1)])    # (2,) in SMEM

    # ---- Pass B: relu(y*scale + shift) + GRN, independent per batch element -
    out_flat = pl.pallas_call(
        _bn_relu_grn_kernel,
        grid=(B,),
        in_specs=[
            pl.BlockSpec((1, C, HW), lambda b: (b, 0, 0)),
            pl.BlockSpec((C, 1), lambda b: (0, 0)),
            pl.BlockSpec((C, 1), lambda b: (0, 0)),
            pl.BlockSpec(memory_space=pltpu.MemorySpace.SMEM),
        ],
        out_specs=pl.BlockSpec((1, C, HW), lambda b: (b, 0, 0)),
        out_shape=jax.ShapeDtypeStruct((B, C, HW), jnp.float32),
        compiler_params=pltpu.CompilerParams(
            dimension_semantics=("parallel",),              # megacore sharding
            vmem_limit_bytes=vmem_limit,
        ),
    )(y_nchw, scale, shift, grn_params)

    # Already NCHW; only a free reshape back to (B, C, H, W).
    return out_flat.reshape(B, C, H, W)


# ---------------------------------------------------------------------------
# Pure-JAX reference mirroring the PyTorch forward (training-mode BN, f32).
# ---------------------------------------------------------------------------
def bsconv_layer_reference(x, pw_w, dw_w, dw_b, bn_gamma, bn_beta,
                           grn_gamma, grn_beta):
    B, C, H, W = x.shape
    p = jnp.einsum("bihw,oi->bohw", x, pw_w.reshape(C, C),
                   precision=jax.lax.Precision.HIGHEST)
    p_pad = jnp.pad(p, ((0, 0), (0, 0), (1, 1), (1, 1)))
    d = jnp.zeros_like(p)
    for kh in range(3):
        for kw in range(3):
            d = d + p_pad[:, :, kh:kh + H, kw:kw + W] * dw_w[:, 0, kh, kw][None, :, None, None]
    d = d + dw_b[None, :, None, None]
    y = x + d
    mean = jnp.mean(y, axis=(0, 2, 3), keepdims=True)
    var = jnp.mean((y - mean) ** 2, axis=(0, 2, 3), keepdims=True)
    z = (y - mean) / jnp.sqrt(var + BN_EPS)
    z = z * bn_gamma[None, :, None, None] + bn_beta[None, :, None, None]
    z = jnp.maximum(z, 0.0)
    gx = jnp.sqrt(jnp.sum(z * z, axis=(2, 3), keepdims=True))   # (B, C, 1, 1)
    nx = gx / (jnp.mean(gx, axis=1, keepdims=True) + GRN_EPS)
    g = jnp.asarray(grn_gamma, jnp.float32).reshape(())
    be = jnp.asarray(grn_beta, jnp.float32).reshape(())
    return g * (z * nx) + be + z


if __name__ == "__main__":
    # Small deterministic setup; BSConvLayer(input=output) so the residual adds.
    B, C, H, W = 2, 16, 16, 16

    key = jax.random.PRNGKey(0)
    ks = jax.random.split(key, 6)
    x = jax.random.normal(ks[0], (B, C, H, W), dtype=jnp.float32)
    pw_w = 0.2 * jax.random.normal(ks[1], (C, C, 1, 1), dtype=jnp.float32)
    dw_w = 0.2 * jax.random.normal(ks[2], (C, 1, 3, 3), dtype=jnp.float32)
    dw_b = 0.05 * jax.random.normal(ks[3], (C,), dtype=jnp.float32)
    bn_gamma = 1.0 + 0.1 * jax.random.normal(ks[4], (C,), dtype=jnp.float32)
    bn_beta = 0.1 * jax.random.normal(ks[5], (C,), dtype=jnp.float32)
    # Module defaults are zeros (GRN becomes identity); use non-zero values so
    # the GRN path is actually exercised.
    grn_gamma = jnp.array([0.3], dtype=jnp.float32)
    grn_beta = jnp.array([0.1], dtype=jnp.float32)

    out = bsconv_layer_pallas(x, pw_w, dw_w, dw_b, bn_gamma, bn_beta,
                              grn_gamma, grn_beta)
    out = jax.block_until_ready(out)

    ref = bsconv_layer_reference(x, pw_w, dw_w, dw_b, bn_gamma, bn_beta,
                                 grn_gamma, grn_beta)
    assert out.shape == (B, C, H, W), out.shape
    max_err = float(jnp.max(jnp.abs(out - ref)))
    # Tolerance loosened for the bf16 y intermediate (expected ~1e-3..1e-2 abs).
    assert jnp.allclose(out, ref, atol=3e-2, rtol=3e-2), max_err

    print("KERNEL_OK")
</pallas_src>

<mosaic_0001>
module attributes {stable_mosaic.version = 11 : i64} {
  func.func @_bsconv_residual_kernel(%arg0: i32, %arg1: memref<1x16x256xf32, #tpu.memory_space<vmem>>, %arg2: memref<16x16xf32, #tpu.memory_space<vmem>>, %arg3: memref<9x16xf32, #tpu.memory_space<vmem>>, %arg4: memref<1x16xf32, #tpu.memory_space<vmem>>, %arg5: memref<1x16x256xbf16, #tpu.memory_space<vmem>>, %arg6: memref<1x16xf32, #tpu.memory_space<vmem>>, %arg7: memref<1x16xf32, #tpu.memory_space<vmem>>, %arg8: memref<18x32x16xf32, #tpu.memory_space<vmem>>) attributes {dimension_semantics = [#tpu.dimension_semantics<arbitrary>], iteration_bounds = array<i64: 2>, scalar_prefetch = 0 : i64, scratch_operands = 1 : i64, tpu.core_type = #tpu.core_type<tc>, window_params = [{transform_indices = @transform_0, window_bounds = array<i64: 1, 16, 256>}, {pipeline_mode = #tpu.pipeline_mode<synchronous>, transform_indices = @transform_1, window_bounds = array<i64: 16, 16>}, {pipeline_mode = #tpu.pipeline_mode<synchronous>, transform_indices = @transform_2, window_bounds = array<i64: 9, 16>}, {pipeline_mode = #tpu.pipeline_mode<synchronous>, transform_indices = @transform_3, window_bounds = array<i64: 1, 16>}, {transform_indices = @transform_4, window_bounds = array<i64: 1, 16, 256>}, {pipeline_mode = #tpu.pipeline_mode<synchronous>, transform_indices = @transform_5, window_bounds = array<i64: 1, 16>}, {pipeline_mode = #tpu.pipeline_mode<synchronous>, transform_indices = @transform_6, window_bounds = array<i64: 1, 16>}]} {
    %c0 = arith.constant 0 : index
    %c0_0 = arith.constant 0 : index
    %c0_1 = arith.constant 0 : index
    %0 = vector.load %arg1[%c0, %c0_0, %c0_1] : memref<1x16x256xf32, #tpu.memory_space<vmem>>, vector<1x16x256xf32>
    %1 = vector.shape_cast %0 : vector<1x16x256xf32> to vector<16x256xf32>
    %2 = tpu.transpose %1, [1, 0] : vector<16x256xf32> -> vector<256x16xf32>
    %c0_2 = arith.constant 0 : index
    %c0_3 = arith.constant 0 : index
    %3 = vector.load %arg2[%c0_2, %c0_3] : memref<16x16xf32, #tpu.memory_space<vmem>>, vector<16x16xf32>
    %cst = arith.constant dense<0.000000e+00> : vector<256x16xf32>
    %4 = tpu.matmul %2, %3, %cst {dimension_numbers = #tpu.dot_dimension_numbers<[1], [0], [0], [1], [0, 0, 1, 1], [], []>} : vector<256x16xf32>, vector<16x16xf32>, vector<256x16xf32> -> vector<256x16xf32>
    %c0_i32 = arith.constant 0 : i32
    %5 = arith.cmpi eq, %arg0, %c0_i32 : i32
    %6 = arith.extui %5 : i1 to i32
    %c0_i32_4 = arith.constant 0 : i32
    %7 = arith.cmpi ne, %6, %c0_i32_4 : i32
    scf.if %7 {
      %cst_33 = arith.constant 0.000000e+00 : f32
      %92 = vector.broadcast %cst_33 : f32 to vector<18x32x16xf32>
      %c0_34 = arith.constant 0 : index
      %c0_35 = arith.constant 0 : index
      %c0_36 = arith.constant 0 : index
      %93 = vector.load %arg8[%c0_34, %c0_35, %c0_36] : memref<18x32x16xf32, #tpu.memory_space<vmem>>, vector<18x32x16xf32>
      tpu.vector_store %arg8[%c0_34, %c0_35, %c0_36], %92 {strides = array<i32>} : memref<18x32x16xf32, #tpu.memory_space<vmem>>, vector<18x32x16xf32>,
    } else {
    }
    %8 = vector.shape_cast %4 : vector<256x16xf32> to vector<16x16x16xf32>
    %c1 = arith.constant 1 : index
    %c8 = arith.constant 8 : index
    %c0_5 = arith.constant 0 : index
    %9 = vector.load %arg8[%c1, %c8, %c0_5] : memref<18x32x16xf32, #tpu.memory_space<vmem>>, vector<16x16x16xf32>
    tpu.vector_store %arg8[%c1, %c8, %c0_5], %8 {strides = array<i32>} : memref<18x32x16xf32, #tpu.memory_space<vmem>>, vector<16x16x16xf32>,
    %c0_6 = arith.constant 0 : index
    %c0_7 = arith.constant 0 : index
    %10 = vector.load %arg3[%c0_6, %c0_7] : memref<9x16xf32, #tpu.memory_space<vmem>>, vector<9x16xf32>
    %11 = vector.shape_cast %2 : vector<256x16xf32> to vector<16x16x16xf32>
    %c0_8 = arith.constant 0 : index
    %c0_9 = arith.constant 0 : index
    %12 = vector.load %arg4[%c0_8, %c0_9] : memref<1x16xf32, #tpu.memory_space<vmem>>, vector<1x16xf32>
    %13 = vector.shape_cast %12 : vector<1x16xf32> to vector<1x1x16xf32>
    %14 = vector.broadcast %13 : vector<1x1x16xf32> to vector<16x16x16xf32>
    %15 = arith.addf %11, %14 : vector<16x16x16xf32>
    %c0_10 = arith.constant 0 : index
    %c7 = arith.constant 7 : index
    %c0_11 = arith.constant 0 : index
    %16 = vector.load %arg8[%c0_10, %c7, %c0_11] : memref<18x32x16xf32, #tpu.memory_space<vmem>>, vector<18x16x16xf32>
    %17 = vector.extract_strided_slice %16 {offsets = [0, 0, 0], sizes = [16, 16, 16], strides = [1, 1, 1]} : vector<18x16x16xf32> to vector<16x16x16xf32>
    %18 = vector.extract_strided_slice %10 {offsets = [0, 0], sizes = [1, 16], strides = [1, 1]} : vector<9x16xf32> to vector<1x16xf32>
    %19 = vector.shape_cast %18 : vector<1x16xf32> to vector<1x1x16xf32>
    %20 = vector.broadcast %19 : vector<1x1x16xf32> to vector<16x16x16xf32>
    %21 = arith.mulf %17, %20 : vector<16x16x16xf32>
    %22 = arith.addf %15, %21 : vector<16x16x16xf32>
    %23 = vector.extract_strided_slice %16 {offsets = [1, 0, 0], sizes = [16, 16, 16], strides = [1, 1, 1]} : vector<18x16x16xf32> to vector<16x16x16xf32>
    %24 = vector.extract_strided_slice %10 {offsets = [3, 0], sizes = [1, 16], strides = [1, 1]} : vector<9x16xf32> to vector<1x16xf32>
    %25 = vector.shape_cast %24 : vector<1x16xf32> to vector<1x1x16xf32>
    %26 = vector.broadcast %25 : vector<1x1x16xf32> to vector<16x16x16xf32>
    %27 = arith.mulf %23, %26 : vector<16x16x16xf32>
    %28 = arith.addf %22, %27 : vector<16x16x16xf32>
    %29 = vector.extract_strided_slice %16 {offsets = [2, 0, 0], sizes = [16, 16, 16], strides = [1, 1, 1]} : vector<18x16x16xf32> to vector<16x16x16xf32>
    %30 = vector.extract_strided_slice %10 {offsets = [6, 0], sizes = [1, 16], strides = [1, 1]} : vector<9x16xf32> to vector<1x16xf32>
    %31 = vector.shape_cast %30 : vector<1x16xf32> to vector<1x1x16xf32>
    %32 = vector.broadcast %31 : vector<1x1x16xf32> to vector<16x16x16xf32>
    %33 = arith.mulf %29, %32 : vector<16x16x16xf32>
    %34 = arith.addf %28, %33 : vector<16x16x16xf32>
    %c0_12 = arith.constant 0 : index
    %c8_13 = arith.constant 8 : index
    %c0_14 = arith.constant 0 : index
    %35 = vector.load %arg8[%c0_12, %c8_13, %c0_14] : memref<18x32x16xf32, #tpu.memory_space<vmem>>, vector<18x16x16xf32>
    %36 = vector.extract_strided_slice %35 {offsets = [0, 0, 0], sizes = [16, 16, 16], strides = [1, 1, 1]} : vector<18x16x16xf32> to vector<16x16x16xf32>
    %37 = vector.extract_strided_slice %10 {offsets = [1, 0], sizes = [1, 16], strides = [1, 1]} : vector<9x16xf32> to vector<1x16xf32>
    %38 = vector.shape_cast %37 : vector<1x16xf32> to vector<1x1x16xf32>
    %39 = vector.broadcast %38 : vector<1x1x16xf32> to vector<16x16x16xf32>
    %40 = arith.mulf %36, %39 : vector<16x16x16xf32>
    %41 = arith.addf %34, %40 : vector<16x16x16xf32>
    %42 = vector.extract_strided_slice %35 {offsets = [1, 0, 0], sizes = [16, 16, 16], strides = [1, 1, 1]} : vector<18x16x16xf32> to vector<16x16x16xf32>
    %43 = vector.extract_strided_slice %10 {offsets = [4, 0], sizes = [1, 16], strides = [1, 1]} : vector<9x16xf32> to vector<1x16xf32>
    %44 = vector.shape_cast %43 : vector<1x16xf32> to vector<1x1x16xf32>
    %45 = vector.broadcast %44 : vector<1x1x16xf32> to vector<16x16x16xf32>
    %46 = arith.mulf %42, %45 : vector<16x16x16xf32>
    %47 = arith.addf %41, %46 : vector<16x16x16xf32>
    %48 = vector.extract_strided_slice %35 {offsets = [2, 0, 0], sizes = [16, 16, 16], strides = [1, 1, 1]} : vector<18x16x16xf32> to vector<16x16x16xf32>
    %49 = vector.extract_strided_slice %10 {offsets = [7, 0], sizes = [1, 16], strides = [1, 1]} : vector<9x16xf32> to vector<1x16xf32>
    %50 = vector.shape_cast %49 : vector<1x16xf32> to vector<1x1x16xf32>
    %51 = vector.broadcast %50 : vector<1x1x16xf32> to vector<16x16x16xf32>
    %52 = arith.mulf %48, %51 : vector<16x16x16xf32>
    %53 = arith.addf %47, %52 : vector<16x16x16xf32>
    %c0_15 = arith.constant 0 : index
    %c9 = arith.constant 9 : index
    %c0_16 = arith.constant 0 : index
    %54 = vector.load %arg8[%c0_15, %c9, %c0_16] : memref<18x32x16xf32, #tpu.memory_space<vmem>>, vector<18x16x16xf32>
    %55 = vector.extract_strided_slice %54 {offsets = [0, 0, 0], sizes = [16, 16, 16], strides = [1, 1, 1]} : vector<18x16x16xf32> to vector<16x16x16xf32>
    %56 = vector.extract_strided_slice %10 {offsets = [2, 0], sizes = [1, 16], strides = [1, 1]} : vector<9x16xf32> to vector<1x16xf32>
    %57 = vector.shape_cast %56 : vector<1x16xf32> to vector<1x1x16xf32>
    %58 = vector.broadcast %57 : vector<1x1x16xf32> to vector<16x16x16xf32>
    %59 = arith.mulf %55, %58 : vector<16x16x16xf32>
    %60 = arith.addf %53, %59 : vector<16x16x16xf32>
    %61 = vector.extract_strided_slice %54 {offsets = [1, 0, 0], sizes = [16, 16, 16], strides = [1, 1, 1]} : vector<18x16x16xf32> to vector<16x16x16xf32>
    %62 = vector.extract_strided_slice %10 {offsets = [5, 0], sizes = [1, 16], strides = [1, 1]} : vector<9x16xf32> to vector<1x16xf32>
    %63 = vector.shape_cast %62 : vector<1x16xf32> to vector<1x1x16xf32>
    %64 = vector.broadcast %63 : vector<1x1x16xf32> to vector<16x16x16xf32>
    %65 = arith.mulf %61, %64 : vector<16x16x16xf32>
    %66 = arith.addf %60, %65 : vector<16x16x16xf32>
    %67 = vector.extract_strided_slice %54 {offsets = [2, 0, 0], sizes = [16, 16, 16], strides = [1, 1, 1]} : vector<18x16x16xf32> to vector<16x16x16xf32>
    %68 = vector.extract_strided_slice %10 {offsets = [8, 0], sizes = [1, 16], strides = [1, 1]} : vector<9x16xf32> to vector<1x16xf32>
    %69 = vector.shape_cast %68 : vector<1x16xf32> to vector<1x1x16xf32>
    %70 = vector.broadcast %69 : vector<1x1x16xf32> to vector<16x16x16xf32>
    %71 = arith.mulf %67, %70 : vector<16x16x16xf32>
    %72 = arith.addf %66, %71 : vector<16x16x16xf32>
    %73 = vector.shape_cast %72 : vector<16x16x16xf32> to vector<256x16xf32>
    %c0_i32_17 = arith.constant 0 : i32
    %74 = arith.cmpi eq, %arg0, %c0_i32_17 : i32
    %75 = arith.extui %74 : i1 to i32
    %c0_i32_18 = arith.constant 0 : i32
    %76 = arith.cmpi ne, %75, %c0_i32_18 : i32
    scf.if %76 {
      %cst_33 = arith.constant 0.000000e+00 : f32
      %92 = vector.broadcast %cst_33 : f32 to vector<1x16xf32>
      %c0_34 = arith.constant 0 : index
      %c0_35 = arith.constant 0 : index
      %93 = vector.load %arg6[%c0_34, %c0_35] : memref<1x16xf32, #tpu.memory_space<vmem>>, vector<1x16xf32>
      tpu.vector_store %arg6[%c0_34, %c0_35], %92 {strides = array<i32>} : memref<1x16xf32, #tpu.memory_space<vmem>>, vector<1x16xf32>,
      %cst_36 = arith.constant 0.000000e+00 : f32
      %94 = vector.broadcast %cst_36 : f32 to vector<1x16xf32>
      %c0_37 = arith.constant 0 : index
      %c0_38 = arith.constant 0 : index
      %95 = vector.load %arg7[%c0_37, %c0_38] : memref<1x16xf32, #tpu.memory_space<vmem>>, vector<1x16xf32>
      tpu.vector_store %arg7[%c0_37, %c0_38], %94 {strides = array<i32>} : memref<1x16xf32, #tpu.memory_space<vmem>>, vector<1x16xf32>,
    } else {
    }
    %cst_19 = arith.constant 1.000000e+00 : f32
    %77 = vector.broadcast %cst_19 : f32 to vector<1x256xf32>
    %c0_20 = arith.constant 0 : index
    %c0_21 = arith.constant 0 : index
    %78 = vector.load %arg6[%c0_20, %c0_21] : memref<1x16xf32, #tpu.memory_space<vmem>>, vector<1x16xf32>
    %cst_22 = arith.constant dense<0.000000e+00> : vector<1x16xf32>
    %79 = tpu.matmul %77, %73, %cst_22 {dimension_numbers = #tpu.dot_dimension_numbers<[1], [0], [0], [1], [0, 0, 1, 1], [], []>} : vector<1x256xf32>, vector<256x16xf32>, vector<1x16xf32> -> vector<1x16xf32>
    %80 = arith.addf %78, %79 : vector<1x16xf32>
    %c0_23 = arith.constant 0 : index
    %c0_24 = arith.constant 0 : index
    %81 = vector.load %arg6[%c0_23, %c0_24] : memref<1x16xf32, #tpu.memory_space<vmem>>, vector<1x16xf32>
    tpu.vector_store %arg6[%c0_23, %c0_24], %80 {strides = array<i32>} : memref<1x16xf32, #tpu.memory_space<vmem>>, vector<1x16xf32>,
    %c0_25 = arith.constant 0 : index
    %c0_26 = arith.constant 0 : index
    %82 = vector.load %arg7[%c0_25, %c0_26] : memref<1x16xf32, #tpu.memory_space<vmem>>, vector<1x16xf32>
    %83 = arith.mulf %73, %73 : vector<256x16xf32>
    %cst_27 = arith.constant dense<0.000000e+00> : vector<1x16xf32>
    %84 = tpu.matmul %77, %83, %cst_27 {dimension_numbers = #tpu.dot_dimension_numbers<[1], [0], [0], [1], [0, 0, 1, 1], [], []>} : vector<1x256xf32>, vector<256x16xf32>, vector<1x16xf32> -> vector<1x16xf32>
    %85 = arith.addf %82, %84 : vector<1x16xf32>
    %c0_28 = arith.constant 0 : index
    %c0_29 = arith.constant 0 : index
    %86 = vector.load %arg7[%c0_28, %c0_29] : memref<1x16xf32, #tpu.memory_space<vmem>>, vector<1x16xf32>
    tpu.vector_store %arg7[%c0_28, %c0_29], %85 {strides = array<i32>} : memref<1x16xf32, #tpu.memory_space<vmem>>, vector<1x16xf32>,
    %87 = tpu.transpose %73, [1, 0] : vector<256x16xf32> -> vector<16x256xf32>
    %88 = arith.truncf %87 : vector<16x256xf32> to vector<16x256xbf16>
    %c0_30 = arith.constant 0 : index
    %c0_31 = arith.constant 0 : index
    %c0_32 = arith.constant 0 : index
    %89 = vector.load %arg5[%c0_30, %c0_31, %c0_32] : memref<1x16x256xbf16, #tpu.memory_space<vmem>>, vector<1x16x256xbf16>
    %90 = vector.shape_cast %89 : vector<1x16x256xbf16> to vector<16x256xbf16>
    %91 = vector.shape_cast %88 : vector<16x256xbf16> to vector<1x16x256xbf16>
    tpu.vector_store %arg5[%c0_30, %c0_31, %c0_32], %91 {strides = array<i32>} : memref<1x16x256xbf16, #tpu.memory_space<vmem>>, vector<1x16x256xbf16>,
    return
  }
  func.func @transform_0(%arg0: i32) -> (i32, i32, i32) {
    %c0_i32 = arith.constant 0 : i32
    %c0_i32_0 = arith.constant 0 : i32
    %c0_i32_1 = arith.constant 0 : i32
    return %arg0, %c0_i32, %c0_i32_0 : i32, i32, i32
  }
  func.func @transform_1(%arg0: i32) -> (i32, i32) {
    %c0_i32 = arith.constant 0 : i32
    %c0_i32_0 = arith.constant 0 : i32
    %c0_i32_1 = arith.constant 0 : i32
    return %c0_i32, %c0_i32_0 : i32, i32
  }
  func.func @transform_2(%arg0: i32) -> (i32, i32) {
    %c0_i32 = arith.constant 0 : i32
    %c0_i32_0 = arith.constant 0 : i32
    %c0_i32_1 = arith.constant 0 : i32
    return %c0_i32, %c0_i32_0 : i32, i32
  }
  func.func @transform_3(%arg0: i32) -> (i32, i32) {
    %c0_i32 = arith.constant 0 : i32
    %c0_i32_0 = arith.constant 0 : i32
    %c0_i32_1 = arith.constant 0 : i32
    return %c0_i32, %c0_i32_0 : i32, i32
  }
  func.func @transform_4(%arg0: i32) -> (i32, i32, i32) {
    %c0_i32 = arith.constant 0 : i32
    %c0_i32_0 = arith.constant 0 : i32
    %c0_i32_1 = arith.constant 0 : i32
    return %arg0, %c0_i32, %c0_i32_0 : i32, i32, i32
  }
  func.func @transform_5(%arg0: i32) -> (i32, i32) {
    %c0_i32 = arith.constant 0 : i32
    %c0_i32_0 = arith.constant 0 : i32
    %c0_i32_1 = arith.constant 0 : i32
    return %c0_i32, %c0_i32_0 : i32, i32
  }
  func.func @transform_6(%arg0: i32) -> (i32, i32) {
    %c0_i32 = arith.constant 0 : i32
    %c0_i32_0 = arith.constant 0 : i32
    %c0_i32_1 = arith.constant 0 : i32
    return %c0_i32, %c0_i32_0 : i32, i32
  }
}

</mosaic_0001>

<llo_original>
// kernel: tpu_custom_call.1
$region0: #{tpu_custom_call.1}
  #allocation0 [shape = 'u32[]', space=smem, size = 0x4, offset = 0x4, fixed_abs, tag = 'smem constant byte address 0x4 - core index']
  #allocation1 [shape = 'u32[72,128]{1,0:T(1,128)}', space=vmem, size = 0x9000, scoped, tag = 'internal scratch']
  #allocation2 [shape = 'f32[18,32,16]{2,1,0:T(8,128)}', space=vmem, size = 0x48000, scoped, tag = 'scratch operand']
  %s0 = inlined_call_operand.hbm [shape: f32[2,16,256], index: 0, kind: input, shape index: {}]
  %s1 = inlined_call_operand.hbm [shape: f32[16,16], index: 1, kind: input, shape index: {}]
  %s2 = inlined_call_operand.hbm [shape: f32[9,16], index: 2, kind: input, shape index: {}]
  %s3 = inlined_call_operand.vmem [shape: f32[1,16], index: 3, kind: input, shape index: {}]
  %s4 = inlined_call_operand.hbm [shape: bf16[2,16,256], index: 4, kind: output, shape index: {0}]
  %s5 = inlined_call_operand.hbm [shape: f32[1,16], index: 5, kind: output, shape index: {1}]
  %s6 = inlined_call_operand.hbm [shape: f32[1,16], index: 6, kind: output, shape index: {2}]
  %7 = xla_tuple %s4, %s5, %s6
  %s8 = sld [smem:[#allocation0]]
  $region85: #{tpu_custom_call.1} parent=0
    _
  %s10 = ssub.s32 1, %s8
  %s11 = scalar_select 0, %s10, %s8
  $region1: #{tpu_custom_call.1} parent=0
    #allocation3 [shape = 'u8[32768]{0}', space=vmem, size = 0x8000, scoped, tag = 'input window, operand 0']
    #allocation4 [shape = 's32[2]{0}', space=sflag, size = 0x8, scoped, tag = 'scoped memory for tpu_custom_call.1']
    #allocation5 [shape = 's32[2]{0}', space=sflag, size = 0x8, scoped, tag = 'scoped memory for tpu_custom_call.1']
    #allocation6 [shape = 'u8[8192]{0}', space=vmem, size = 0x2000, scoped, tag = 'input window, operand 1, single buffered']
    #allocation7 [shape = 's32[1]{0}', space=sflag, size = 0x4, scoped, tag = 'scoped memory for tpu_custom_call.1']
    #allocation8 [shape = 'u8[8192]{0}', space=vmem, size = 0x2000, scoped, tag = 'input window, operand 2, single buffered']
    #allocation9 [shape = 'u8[16384]{0}', space=vmem, size = 0x4000, scoped, tag = 'output window, operand 0']
    #allocation10 [shape = 'u8[512]{0}', space=vmem, size = 0x400, scoped, tag = 'output window, operand 1, single buffered']
    #allocation11 [shape = 's32[1]{0}', space=sflag, size = 0x4, scoped, tag = 'scoped memory for tpu_custom_call.1']
    #allocation12 [shape = 'u8[512]{0}', space=vmem, size = 0x400, scoped, tag = 'output window, operand 2, single buffered']
    %12 = vsyncpa [#allocation4], 0
    %s13 = scalar_lea.sflag [#allocation4], 1
    %14 = vsyncpa %s13, 0
    %15 = vsyncpa [#allocation7], 0
    %16 = vsyncpa [#allocation5], 0
    %s17 = scalar_lea.sflag [#allocation5], 1
    %18 = vsyncpa %s17, 0
    %19 = vsyncpa [#allocation11], 0
    loop: start=0, step=1, limit=4
    $region2: #{tpu_custom_call.1} parent=1 // loop_pre_header
      _
    $region3: #{tpu_custom_call.1} parent=1 // loop_header
      %s21 = sphi 0, %s25
      %p22 = scmp.ge.s32.totalorder %s21, 4
      %s31 = sphi 0, %s33
      %s34 = sphi 0, %s31
      %s35 = sphi 0, %s34
      %s51 = sphi 0, %s35
      %s55 = sphi 0, %s55
      %s57 = sphi 0, %s55
      %s58 = sphi 0, %s57
      %s72 = sphi 0, %s58
      %s76 = sphi 0, %s76
      %s78 = sphi 0, %s76
      %s79 = sphi 0, %s78
      %s93 = sphi 0, %s79
      %s97 = sphi 0, %s97
      %s99 = sphi 0, %s97
      %s100 = sphi 0, %s99
      %s114 = sphi 0, %s100
      %s120 = sphi 0, %s122
      %s123 = sphi 0, %s120
      %s124 = sphi 0, %s123
      %s140 = sphi 0, %s124
      %s144 = sphi 0, %s144
      %s146 = sphi 0, %s144
      %s147 = sphi 0, %s146
      %s161 = sphi 0, %s147
      %s165 = sphi 0, %s165
      %s167 = sphi 0, %s165
      %s168 = sphi 0, %s167
      %s182 = sphi 0, %s168
    $region4: #{tpu_custom_call.1} parent=1 // loop_header_branch
      %24 = sbr.rel (%p22) target = $region8
    $region5: #{tpu_custom_call.1} parent=1 // loop_body
      %s26 = ssub.s32 %s21, 1
      %s27 = ssub.s32 %s21, 2
      %s28 = sadd.s32 %s21, 1
      %s29 = ssub.s32 %s21, %s28
      %p30 = scmp.eq.s32.totalorder %s29, 0
      %s32 = sadd.s32 %s31, 1
      %s33 = scalar_select %p30, %s31, %s32
      %p36 = pneg %p30
      %p37 = scmp.eq.s32.totalorder %s21, 1
      %p38 = por %p36, %p37
      %p39 = scmp.ne.s32.totalorder %s31, %s34
      %p40 = scmp.eq.s32.totalorder %s21, 0
      %p41 = por %p39, %p40
      %p42 = scmp.ne.s32.totalorder %s31, %s34
      %p43 = scmp.eq.s32.totalorder %s26, 1
      %p44 = por %p42, %p43
      %p45 = scmp.ne.s32.totalorder %s34, %s35
      %p46 = scmp.eq.s32.totalorder %s26, 0
      %p47 = por %p45, %p46
      %p48 = scmp.ne.s32.totalorder %s34, %s35
      %p49 = scmp.eq.s32.totalorder %s27, 1
      %p50 = por %p48, %p49
      %p52 = scmp.ne.s32.totalorder %s35, %s51
      %p53 = scmp.eq.s32.totalorder %s27, 0
      %p54 = por %p52, %p53
      %s56 = sadd.s32 %s55, 1
      %p59 = scmp.eq.s32.totalorder %s21, 1
      %p60 = scmp.ne.s32.totalorder %s55, %s57
      %p61 = scmp.eq.s32.totalorder %s21, 0
      %p62 = por %p60, %p61
      %p63 = scmp.ne.s32.totalorder %s55, %s57
      %p64 = scmp.eq.s32.totalorder %s26, 1
      %p65 = por %p63, %p64
      %p66 = scmp.ne.s32.totalorder %s57, %s58
      %p67 = scmp.eq.s32.totalorder %s26, 0
      %p68 = por %p66, %p67
      %p69 = scmp.ne.s32.totalorder %s57, %s58
      %p70 = scmp.eq.s32.totalorder %s27, 1
      %p71 = por %p69, %p70
      %p73 = scmp.ne.s32.totalorder %s58, %s72
      %p74 = scmp.eq.s32.totalorder %s27, 0
      %p75 = por %p73, %p74
      %s77 = sadd.s32 %s76, 1
      %p80 = scmp.eq.s32.totalorder %s21, 1
      %p81 = scmp.ne.s32.totalorder %s76, %s78
      %p82 = scmp.eq.s32.totalorder %s21, 0
      %p83 = por %p81, %p82
      %p84 = scmp.ne.s32.totalorder %s76, %s78
      %p85 = scmp.eq.s32.totalorder %s26, 1
      %p86 = por %p84, %p85
      %p87 = scmp.ne.s32.totalorder %s78, %s79
      %p88 = scmp.eq.s32.totalorder %s26, 0
      %p89 = por %p87, %p88
      %p90 = scmp.ne.s32.totalorder %s78, %s79
      %p91 = scmp.eq.s32.totalorder %s27, 1
      %p92 = por %p90, %p91
      %p94 = scmp.ne.s32.totalorder %s79, %s93
      %p95 = scmp.eq.s32.totalorder %s27, 0
      %p96 = por %p94, %p95
      %s98 = sadd.s32 %s97, 1
      %p101 = scmp.eq.s32.totalorder %s21, 1
      %p102 = scmp.ne.s32.totalorder %s97, %s99
      %p103 = scmp.eq.s32.totalorder %s21, 0
      %p104 = por %p102, %p103
      %p105 = scmp.ne.s32.totalorder %s97, %s99
      %p106 = scmp.eq.s32.totalorder %s26, 1
      %p107 = por %p105, %p106
      %p108 = scmp.ne.s32.totalorder %s99, %s100
      %p109 = scmp.eq.s32.totalorder %s26, 0
      %p110 = por %p108, %p109
      %p111 = scmp.ne.s32.totalorder %s99, %s100
      %p112 = scmp.eq.s32.totalorder %s27, 1
      %p113 = por %p111, %p112
      %p115 = scmp.ne.s32.totalorder %s100, %s114
      %p116 = scmp.eq.s32.totalorder %s27, 0
      %p117 = por %p115, %p116
      %s118 = ssub.s32 %s21, %s28
      %p119 = scmp.eq.s32.totalorder %s118, 0
      %s121 = sadd.s32 %s120, 1
      %s122 = scalar_select %p119, %s120, %s121
      %p125 = pneg %p119
      %p126 = scmp.eq.s32.totalorder %s21, 1
      %p127 = por %p125, %p126
      %p128 = scmp.ne.s32.totalorder %s120, %s123
      %p129 = scmp.eq.s32.totalorder %s21, 0
      %p130 = por %p128, %p129
      %p131 = scmp.ne.s32.totalorder %s120, %s123
      %p132 = scmp.eq.s32.totalorder %s26, 1
      %p133 = por %p131, %p132
      %p134 = scmp.ne.s32.totalorder %s123, %s124
      %p135 = scmp.eq.s32.totalorder %s26, 0
      %p136 = por %p134, %p135
      %p137 = scmp.ne.s32.totalorder %s123, %s124
      %p138 = scmp.eq.s32.totalorder %s27, 1
      %p139 = por %p137, %p138
      %p141 = scmp.ne.s32.totalorder %s124, %s140
      %p142 = scmp.eq.s32.totalorder %s27, 0
      %p143 = por %p141, %p142
      %s145 = sadd.s32 %s144, 1
      %p148 = scmp.eq.s32.totalorder %s21, 1
      %p149 = scmp.ne.s32.totalorder %s144, %s146
      %p150 = scmp.eq.s32.totalorder %s21, 0
      %p151 = por %p149, %p150
      %p152 = scmp.ne.s32.totalorder %s144, %s146
      %p153 = scmp.eq.s32.totalorder %s26, 1
      %p154 = por %p152, %p153
      %p155 = scmp.ne.s32.totalorder %s146, %s147
      %p156 = scmp.eq.s32.totalorder %s26, 0
      %p157 = por %p155, %p156
      %p158 = scmp.ne.s32.totalorder %s146, %s147
      %p159 = scmp.eq.s32.totalorder %s27, 1
      %p160 = por %p158, %p159
      %p162 = scmp.ne.s32.totalorder %s147, %s161
      %p163 = scmp.eq.s32.totalorder %s27, 0
      %p164 = por %p162, %p163
      %s166 = sadd.s32 %s165, 1
      %p169 = scmp.eq.s32.totalorder %s21, 1
      %p170 = scmp.ne.s32.totalorder %s165, %s167
      %p171 = scmp.eq.s32.totalorder %s21, 0
      %p172 = por %p170, %p171
      %p173 = scmp.ne.s32.totalorder %s165, %s167
      %p174 = scmp.eq.s32.totalorder %s26, 1
      %p175 = por %p173, %p174
      %p176 = scmp.ne.s32.totalorder %s167, %s168
      %p177 = scmp.eq.s32.totalorder %s26, 0
      %p178 = por %p176, %p177
      %p179 = scmp.ne.s32.totalorder %s167, %s168
      %p180 = scmp.eq.s32.totalorder %s27, 1
      %p181 = por %p179, %p180
      %p183 = scmp.ne.s32.totalorder %s168, %s182
      %p184 = scmp.eq.s32.totalorder %s27, 0
      %p185 = por %p183, %p184
      %p186 = scmp.le.s32.totalorder 1, %s21
      %p187 = scmp.lt.s32.totalorder %s21, 3
      %p188 = pnand %p186, %p187
      %p189 = pneg %p188
      // Predicated region
      $region9: #{tpu_custom_call.1} parent=5 // pred_check
        _
      $region10: #{tpu_custom_call.1} parent=5 // pred_check_branch
        %191 = sbr.rel (%p188) target = $region12
      $region11: #{tpu_custom_call.1} parent=5 // pred_region
        %s192 = ssub.s32 %s21, 1
        // Predicated region
        $region13: #{tpu_custom_call.1} parent=11 // pred_check
          %p193 = pneg %p68
        $region14: #{tpu_custom_call.1} parent=11 // pred_check_branch
          %195 = sbr.rel (%p193) target = $region16
        $region15: #{tpu_custom_call.1} parent=11 // pred_region
          %197 = vsyncadd [#allocation7], 0
          %s198 = sshll.u32 %s1, 4
          %s199 = int_to_ptr.hbm [resolvable:$true] %s198
          %s200 = sshll.u32 [#allocation6], 4
          %s201 = int_to_ptr.vmem [resolvable:$true] %s200
          %206 = dma.hbm_to_vmem [thread:$0]  %s199, 256, %s201, [#allocation7], 128, 128, 8
        $region16: #{tpu_custom_call.1} parent=11 // pred_fallthru
          _
        // Predicated region
        $region17: #{tpu_custom_call.1} parent=11 // pred_check
          %p207 = pneg %p89
        $region18: #{tpu_custom_call.1} parent=11 // pred_check_branch
          %209 = sbr.rel (%p207) target = $region20
        $region19: #{tpu_custom_call.1} parent=11 // pred_region
          %211 = vsyncadd [#allocation7], 0
          %s212 = sshll.u32 %s2, 4
          %s213 = int_to_ptr.hbm [resolvable:$true] %s212
          %s214 = sshll.u32 [#allocation8], 4
          %s215 = int_to_ptr.vmem [resolvable:$true] %s214
          %220 = dma.hbm_to_vmem [thread:$0]  %s213, 256, %s215, [#allocation7], 128, 128, 8
        $region20: #{tpu_custom_call.1} parent=11 // pred_fallthru
          _
        // Predicated region
        $region21: #{tpu_custom_call.1} parent=11 // pred_check
          %p221 = pneg %p110
        $region22: #{tpu_custom_call.1} parent=11 // pred_check_branch
          %223 = sbr.rel (%p221) target = $region24
        $region23: #{tpu_custom_call.1} parent=11 // pred_region
          _
        $region24: #{tpu_custom_call.1} parent=11 // pred_fallthru
          _
      $region12: #{tpu_custom_call.1} parent=5 // pred_fallthru
        _
      %p224 = scmp.lt.s32.totalorder %s21, 2
      // Predicated region
      $region25: #{tpu_custom_call.1} parent=5 // pred_check
        %p225 = pneg %p224
      $region26: #{tpu_custom_call.1} parent=5 // pred_check_branch
        %227 = sbr.rel (%p225) target = $region28
      $region27: #{tpu_custom_call.1} parent=5 // pred_region
        // Predicated region
        $region29: #{tpu_custom_call.1} parent=27 // pred_check
          %p228 = pneg %p41
        $region30: #{tpu_custom_call.1} parent=27 // pred_check_branch
          %230 = sbr.rel (%p228) target = $region32
        $region31: #{tpu_custom_call.1} parent=27 // pred_region
          %s231 = sand.u32 %s31, 1
          %s232 = scalar_lea.sflag [#allocation4], %s231
          %s233 = sand.u32 %s31, 1
          %s234 = smul.addr %s233, 32
          %s235 = scalar_lea.vmem [#allocation3], %s234
          %237 = vsyncadd %s232, 0
          %s238 = smul.addr %s21, 4
          %s239 = smul.addr %s238, 8
          %s240 = scalar_lea.hbm %s0, %s239
          %s241 = sshll.u32 %s240, 4
          %s242 = int_to_ptr.hbm [resolvable:$true] %s241
          %s243 = sshll.u32 %s235, 4
          %s244 = int_to_ptr.vmem [resolvable:$true] %s243
          %249 = dma.hbm_to_vmem [thread:$0]  %s242, 512, %s244, %s232, 256, 256, 16
        $region32: #{tpu_custom_call.1} parent=27 // pred_fallthru
          _
      $region28: #{tpu_custom_call.1} parent=5 // pred_fallthru
        _
      %p250 = scmp.le.s32.totalorder 1, %s21
      %p251 = scmp.lt.s32.totalorder %s21, 3
      %p252 = pnand %p250, %p251
      %p253 = pneg %p252
      // Predicated region
      $region33: #{tpu_custom_call.1} parent=5 // pred_check
        _
      $region34: #{tpu_custom_call.1} parent=5 // pred_check_branch
        %255 = sbr.rel (%p252) target = $region36
      $region35: #{tpu_custom_call.1} parent=5 // pred_region
        %s256 = ssub.s32 %s21, 1
        %s257 = sand.u32 %s34, 1
        %s258 = scalar_lea.sflag [#allocation4], %s257
        %s259 = sand.u32 %s34, 1
        %s260 = smul.addr %s259, 32
        %s261 = scalar_lea.vmem [#allocation3], %s260
        // Predicated region
        $region37: #{tpu_custom_call.1} parent=35 // pred_check
          %p262 = pneg %p47
        $region38: #{tpu_custom_call.1} parent=35 // pred_check_branch
          %264 = sbr.rel (%p262) target = $region40
        $region39: #{tpu_custom_call.1} parent=35 // pred_region
          %266 = dma.done %s258, 512
        $region40: #{tpu_custom_call.1} parent=35 // pred_fallthru
          _
        // Predicated region
        $region41: #{tpu_custom_call.1} parent=35 // pred_check
          %p267 = pneg %p68
        $region42: #{tpu_custom_call.1} parent=35 // pred_check_branch
          %269 = sbr.rel (%p267) target = $region44
        $region43: #{tpu_custom_call.1} parent=35 // pred_region
          %271 = dma.done [#allocation7], 256
        $region44: #{tpu_custom_call.1} parent=35 // pred_fallthru
          _
        // Predicated region
        $region45: #{tpu_custom_call.1} parent=35 // pred_check
          %p272 = pneg %p89
        $region46: #{tpu_custom_call.1} parent=35 // pred_check_branch
          %274 = sbr.rel (%p272) target = $region48
        $region47: #{tpu_custom_call.1} parent=35 // pred_region
          %276 = dma.done [#allocation7], 256
        $region48: #{tpu_custom_call.1} parent=35 // pred_fallthru
          _
        %s277 = sand.u32 %s34, 1
        %s278 = scalar_lea.sflag [#allocation4], %s277
        %s279 = sand.u32 %s34, 1
        %s280 = smul.addr %s279, 32
        %s281 = scalar_lea.vmem [#allocation3], %s280
        %p282 = pneg %p47
        %p283 = pneg %p44
        %p284 = pneg %p68
        %p285 = pneg %p65
        %p286 = pneg %p89
        %p287 = pneg %p86
        %p288 = pneg %p110
        %p289 = pneg %p107
        %p290 = pneg %p136
        %p291 = pneg %p133
        %s292 = sand.u32 %s123, 1
        %s293 = scalar_lea.sflag [#allocation5], %s292
        %s294 = sand.u32 %s123, 1
        %s295 = smul.addr %s294, 16
        %s296 = scalar_lea.vmem [#allocation9], %s295
        %p297 = pneg %p157
        %p298 = pneg %p154
        %p299 = pneg %p178
        %p300 = pneg %p175
        %v301 = vld [vmem:[%s261] sm:$0xff]
        %v302 = vld [vmem:[%s261 + $0x8] sm:$0xff]
        %v303 = vld [vmem:[%s261 + $0x10] sm:$0xff]
        %v304 = vld [vmem:[%s261 + $0x18] sm:$0xff]
        %305 = vxpose.xlu0.b32.start [1/16] %v301, 128
        %306 = vxpose.xlu0.b32.cont [2/16] %v303, 128
        %307 = vxpose.xlu0.b32.cont [3/16] 0.0, 128
        %308 = vxpose.xlu0.b32.cont [4/16] 0.0, 128
        %309 = vxpose.xlu0.b32.cont [5/16] 0.0, 128
        %310 = vxpose.xlu0.b32.cont [6/16] 0.0, 128
        %311 = vxpose.xlu0.b32.cont [7/16] 0.0, 128
        %312 = vxpose.xlu0.b32.cont [8/16] 0.0, 128
        %313 = vxpose.xlu0.b32.cont [9/16] 0.0, 128
        %314 = vxpose.xlu0.b32.cont [10/16] 0.0, 128
        %315 = vxpose.xlu0.b32.cont [11/16] 0.0, 128
        %316 = vxpose.xlu0.b32.cont [12/16] 0.0, 128
        %317 = vxpose.xlu0.b32.cont [13/16] 0.0, 128
        %318 = vxpose.xlu0.b32.cont [14/16] 0.0, 128
        %319 = vxpose.xlu0.b32.cont [15/16] 0.0, 128
        %320 = vxpose.xlu0.b32.end [16/16] 0.0, 128
        %v321 = vpop.trf.xlu0
        %v322 = vpop.trf.xlu0
        %v323 = vpop.trf.xlu0
        %v324 = vpop.trf.xlu0
        %v325 = vpop.trf.xlu0
        %v326 = vpop.trf.xlu0
        %v327 = vpop.trf.xlu0
        %v328 = vpop.trf.xlu0
        %v329 = vpop.trf.xlu0
        %v330 = vpop.trf.xlu0
        %v331 = vpop.trf.xlu0
        %v332 = vpop.trf.xlu0
        %v333 = vpop.trf.xlu0
        %v334 = vpop.trf.xlu0
        %v335 = vpop.trf.xlu0
        %v336 = vpop.trf.xlu0
        %337 = vxpose.xlu0.b32.start [1/16] %v302, 128
        %338 = vxpose.xlu0.b32.cont [2/16] %v304, 128
        %339 = vxpose.xlu0.b32.cont [3/16] 0.0, 128
        %340 = vxpose.xlu0.b32.cont [4/16] 0.0, 128
        %341 = vxpose.xlu0.b32.cont [5/16] 0.0, 128
        %342 = vxpose.xlu0.b32.cont [6/16] 0.0, 128
        %343 = vxpose.xlu0.b32.cont [7/16] 0.0, 128
        %344 = vxpose.xlu0.b32.cont [8/16] 0.0, 128
        %345 = vxpose.xlu0.b32.cont [9/16] 0.0, 128
        %346 = vxpose.xlu0.b32.cont [10/16] 0.0, 128
        %347 = vxpose.xlu0.b32.cont [11/16] 0.0, 128
        %348 = vxpose.xlu0.b32.cont [12/16] 0.0, 128
        %349 = vxpose.xlu0.b32.cont [13/16] 0.0, 128
        %350 = vxpose.xlu0.b32.cont [14/16] 0.0, 128
        %351 = vxpose.xlu0.b32.cont [15/16] 0.0, 128
        %352 = vxpose.xlu0.b32.end [16/16] 0.0, 128
        %v353 = vpop.trf.xlu0
        %v354 = vpop.trf.xlu0
        %v355 = vpop.trf.xlu0
        %v356 = vpop.trf.xlu0
        %v357 = vpop.trf.xlu0
        %v358 = vpop.trf.xlu0
        %v359 = vpop.trf.xlu0
        %v360 = vpop.trf.xlu0
        %v361 = vpop.trf.xlu0
        %v362 = vpop.trf.xlu0
        %v363 = vpop.trf.xlu0
        %v364 = vpop.trf.xlu0
        %v365 = vpop.trf.xlu0
        %v366 = vpop.trf.xlu0
        %v367 = vpop.trf.xlu0
        %v368 = vpop.trf.xlu0
        %v369 = vld [vmem:[#allocation6] sm:$0xff]
        %v370 = vld [vmem:[#allocation6 + $0x8] sm:$0xff]
        %vm371 = vcmask 130048
        %v373 = vsel %vm371, %v321, 0
        %v376 = vsel %vm371, %v322, 0
        %v379 = vsel %vm371, %v323, 0
        %v382 = vsel %vm371, %v324, 0
        %v385 = vsel %vm371, %v325, 0
        %v388 = vsel %vm371, %v326, 0
        %v391 = vsel %vm371, %v327, 0
        %v394 = vsel %vm371, %v328, 0
        %v397 = vsel %vm371, %v329, 0
        %v400 = vsel %vm371, %v330, 0
        %v403 = vsel %vm371, %v331, 0
        %v406 = vsel %vm371, %v332, 0
        %v409 = vsel %vm371, %v333, 0
        %v412 = vsel %vm371, %v334, 0
        %v415 = vsel %vm371, %v335, 0
        %v418 = vsel %vm371, %v336, 0
        %v421 = vsel %vm371, %v353, 0
        %v424 = vsel %vm371, %v354, 0
        %v427 = vsel %vm371, %v355, 0
        %v430 = vsel %vm371, %v356, 0
        %v433 = vsel %vm371, %v357, 0
        %v436 = vsel %vm371, %v358, 0
        %v439 = vsel %vm371, %v359, 0
        %v442 = vsel %vm371, %v360, 0
        %v445 = vsel %vm371, %v361, 0
        %v448 = vsel %vm371, %v362, 0
        %v451 = vsel %vm371, %v363, 0
        %v454 = vsel %vm371, %v364, 0
        %v457 = vsel %vm371, %v365, 0
        %v460 = vsel %vm371, %v366, 0
        %v463 = vsel %vm371, %v367, 0
        %v466 = vsel %vm371, %v368, 0
        %468 = vmatpush.msra.mxu0 0.0
        %469 = vmatpush.msra.mxu0 0.0
        %470 = vmatpush.msra.mxu0 0.0
        %471 = vmatpush.msra.mxu0 0.0
        %472 = vmatpush.msra.mxu0 0.0
        %473 = vmatpush.msra.mxu0 0.0
        %474 = vmatpush.msra.mxu0 0.0
        %475 = vmatpush.msra.mxu0 0.0
        %476 = vmatpush.msra.mxu0 0.0
        %477 = vmatpush.msra.mxu0 0.0
        %478 = vmatpush.msra.mxu0 0.0
        %479 = vmatpush.msra.mxu0 0.0
        %480 = vmatpush.msra.mxu0 0.0
        %481 = vmatpush.msra.mxu0 0.0
        %482 = vmatpush.msra.mxu0 %v370
        %483 = vmatpush.msra.mxu0 %v369
        %484 = vmatmul.f32.gmra.mxu0 %v373
        %v485 = vpop.f32.mrf.mxu0
        %v486 = vadd.f32 0.0, %v485
        %487 = vmatmul.f32.gmra.mxu0 %v376
        %v488 = vpop.f32.mrf.mxu0
        %v489 = vadd.f32 0.0, %v488
        %490 = vmatmul.f32.gmra.mxu0 %v379
        %v491 = vpop.f32.mrf.mxu0
        %v492 = vadd.f32 0.0, %v491
        %493 = vmatmul.f32.gmra.mxu0 %v382
        %v494 = vpop.f32.mrf.mxu0
        %v495 = vadd.f32 0.0, %v494
        %496 = vmatmul.f32.gmra.mxu0 %v385
        %v497 = vpop.f32.mrf.mxu0
        %v498 = vadd.f32 0.0, %v497
        %499 = vmatmul.f32.gmra.mxu0 %v388
        %v500 = vpop.f32.mrf.mxu0
        %v501 = vadd.f32 0.0, %v500
        %502 = vmatmul.f32.gmra.mxu0 %v391
        %v503 = vpop.f32.mrf.mxu0
        %v504 = vadd.f32 0.0, %v503
        %505 = vmatmul.f32.gmra.mxu0 %v394
        %v506 = vpop.f32.mrf.mxu0
        %v507 = vadd.f32 0.0, %v506
        %508 = vmatmul.f32.gmra.mxu0 %v397
        %v509 = vpop.f32.mrf.mxu0
        %v510 = vadd.f32 0.0, %v509
        %511 = vmatmul.f32.gmra.mxu0 %v400
        %v512 = vpop.f32.mrf.mxu0
        %v513 = vadd.f32 0.0, %v512
        %514 = vmatmul.f32.gmra.mxu0 %v403
        %v515 = vpop.f32.mrf.mxu0
        %v516 = vadd.f32 0.0, %v515
        %517 = vmatmul.f32.gmra.mxu0 %v406
        %v518 = vpop.f32.mrf.mxu0
        %v519 = vadd.f32 0.0, %v518
        %520 = vmatmul.f32.gmra.mxu0 %v409
        %v521 = vpop.f32.mrf.mxu0
        %v522 = vadd.f32 0.0, %v521
        %523 = vmatmul.f32.gmra.mxu0 %v412
        %v524 = vpop.f32.mrf.mxu0
        %v525 = vadd.f32 0.0, %v524
        %526 = vmatmul.f32.gmra.mxu0 %v415
        %v527 = vpop.f32.mrf.mxu0
        %v528 = vadd.f32 0.0, %v527
        %529 = vmatmul.f32.gmra.mxu0 %v418
        %v530 = vpop.f32.mrf.mxu0
        %v531 = vadd.f32 0.0, %v530
        %532 = vmatmul.f32.gmra.mxu0 %v421
        %v533 = vpop.f32.mrf.mxu0
        %v534 = vadd.f32 0.0, %v533
        %535 = vmatmul.f32.gmra.mxu0 %v424
        %v536 = vpop.f32.mrf.mxu0
        %v537 = vadd.f32 0.0, %v536
        %538 = vmatmul.f32.gmra.mxu0 %v427
        %v539 = vpop.f32.mrf.mxu0
        %v540 = vadd.f32 0.0, %v539
        %541 = vmatmul.f32.gmra.mxu0 %v430
        %v542 = vpop.f32.mrf.mxu0
        %v543 = vadd.f32 0.0, %v542
        %544 = vmatmul.f32.gmra.mxu0 %v433
        %v545 = vpop.f32.mrf.mxu0
        %v546 = vadd.f32 0.0, %v545
        %547 = vmatmul.f32.gmra.mxu0 %v436
        %v548 = vpop.f32.mrf.mxu0
        %v549 = vadd.f32 0.0, %v548
        %550 = vmatmul.f32.gmra.mxu0 %v439
        %v551 = vpop.f32.mrf.mxu0
        %v552 = vadd.f32 0.0, %v551
        %553 = vmatmul.f32.gmra.mxu0 %v442
        %v554 = vpop.f32.mrf.mxu0
        %v555 = vadd.f32 0.0, %v554
        %556 = vmatmul.f32.gmra.mxu0 %v445
        %v557 = vpop.f32.mrf.mxu0
        %v558 = vadd.f32 0.0, %v557
        %559 = vmatmul.f32.gmra.mxu0 %v448
        %v560 = vpop.f32.mrf.mxu0
        %v561 = vadd.f32 0.0, %v560
        %562 = vmatmul.f32.gmra.mxu0 %v451
        %v563 = vpop.f32.mrf.mxu0
        %v564 = vadd.f32 0.0, %v563
        %565 = vmatmul.f32.gmra.mxu0 %v454
        %v566 = vpop.f32.mrf.mxu0
        %v567 = vadd.f32 0.0, %v566
        %568 = vmatmul.f32.gmra.mxu0 %v457
        %v569 = vpop.f32.mrf.mxu0
        %v570 = vadd.f32 0.0, %v569
        %571 = vmatmul.f32.gmra.mxu0 %v460
        %v572 = vpop.f32.mrf.mxu0
        %v573 = vadd.f32 0.0, %v572
        %574 = vmatmul.f32.gmra.mxu0 %v463
        %v575 = vpop.f32.mrf.mxu0
        %v576 = vadd.f32 0.0, %v575
        %577 = vmatmul.f32.gmra.mxu0 %v466
        %v578 = vpop.f32.mrf.mxu0
        %v579 = vadd.f32 0.0, %v578
        %580 = vdwg.mxu0
        %p581 = scmp.eq.s32.totalorder %s26, 0
        // Predicated region
        $region49: #{tpu_custom_call.1} parent=35 // pred_check
          %p582 = pneg %p581
        $region50: #{tpu_custom_call.1} parent=35 // pred_check_branch
          %584 = sbr.rel (%p582) target = $region52
        $region51: #{tpu_custom_call.1} parent=35 // pred_region
          %585 = vst.msk [vmem:[#allocation2] sm:$0xff] %vm371, 0.0
          %586 = vst.msk [vmem:[#allocation2 + $0x8] sm:$0xff] %vm371, 0.0
          %587 = vst.msk [vmem:[#allocation2 + $0x10] sm:$0xff] %vm371, 0.0
          %588 = vst.msk [vmem:[#allocation2 + $0x18] sm:$0xff] %vm371, 0.0
          %589 = vst.msk [vmem:[#allocation2 + $0x20] sm:$0xff] %vm371, 0.0
          %590 = vst.msk [vmem:[#allocation2 + $0x28] sm:$0xff] %vm371, 0.0
          %591 = vst.msk [vmem:[#allocation2 + $0x30] sm:$0xff] %vm371, 0.0
          %592 = vst.msk [vmem:[#allocation2 + $0x38] sm:$0xff] %vm371, 0.0
          %593 = vst.msk [vmem:[#allocation2 + $0x40] sm:$0xff] %vm371, 0.0
          %594 = vst.msk [vmem:[#allocation2 + $0x48] sm:$0xff] %vm371, 0.0
          %595 = vst.msk [vmem:[#allocation2 + $0x50] sm:$0xff] %vm371, 0.0
          %596 = vst.msk [vmem:[#allocation2 + $0x58] sm:$0xff] %vm371, 0.0
          %597 = vst.msk [vmem:[#allocation2 + $0x60] sm:$0xff] %vm371, 0.0
          %598 = vst.msk [vmem:[#allocation2 + $0x68] sm:$0xff] %vm371, 0.0
          %599 = vst.msk [vmem:[#allocation2 + $0x70] sm:$0xff] %vm371, 0.0
          %600 = vst.msk [vmem:[#allocation2 + $0x78] sm:$0xff] %vm371, 0.0
          %601 = vst.msk [vmem:[#allocation2 + $0x80] sm:$0xff] %vm371, 0.0
          %602 = vst.msk [vmem:[#allocation2 + $0x88] sm:$0xff] %vm371, 0.0
          %603 = vst.msk [vmem:[#allocation2 + $0x90] sm:$0xff] %vm371, 0.0
          %604 = vst.msk [vmem:[#allocation2 + $0x98] sm:$0xff] %vm371, 0.0
          %605 = vst.msk [vmem:[#allocation2 + $0xa0] sm:$0xff] %vm371, 0.0
          %606 = vst.msk [vmem:[#allocation2 + $0xa8] sm:$0xff] %vm371, 0.0
          %607 = vst.msk [vmem:[#allocation2 + $0xb0] sm:$0xff] %vm371, 0.0
          %608 = vst.msk [vmem:[#allocation2 + $0xb8] sm:$0xff] %vm371, 0.0
          %609 = vst.msk [vmem:[#allocation2 + $0xc0] sm:$0xff] %vm371, 0.0
          %610 = vst.msk [vmem:[#allocation2 + $0xc8] sm:$0xff] %vm371, 0.0
          %611 = vst.msk [vmem:[#allocation2 + $0xd0] sm:$0xff] %vm371, 0.0
          %612 = vst.msk [vmem:[#allocation2 + $0xd8] sm:$0xff] %vm371, 0.0
          %613 = vst.msk [vmem:[#allocation2 + $0xe0] sm:$0xff] %vm371, 0.0
          %614 = vst.msk [vmem:[#allocation2 + $0xe8] sm:$0xff] %vm371, 0.0
          %615 = vst.msk [vmem:[#allocation2 + $0xf0] sm:$0xff] %vm371, 0.0
          %616 = vst.msk [vmem:[#allocation2 + $0xf8] sm:$0xff] %vm371, 0.0
          %617 = vst.msk [vmem:[#allocation2 + $0x100] sm:$0xff] %vm371, 0.0
          %618 = vst.msk [vmem:[#allocation2 + $0x108] sm:$0xff] %vm371, 0.0
          %619 = vst.msk [vmem:[#allocation2 + $0x110] sm:$0xff] %vm371, 0.0
          %620 = vst.msk [vmem:[#allocation2 + $0x118] sm:$0xff] %vm371, 0.0
          %621 = vst.msk [vmem:[#allocation2 + $0x120] sm:$0xff] %vm371, 0.0
          %622 = vst.msk [vmem:[#allocation2 + $0x128] sm:$0xff] %vm371, 0.0
          %623 = vst.msk [vmem:[#allocation2 + $0x130] sm:$0xff] %vm371, 0.0
          %624 = vst.msk [vmem:[#allocation2 + $0x138] sm:$0xff] %vm371, 0.0
          %625 = vst.msk [vmem:[#allocation2 + $0x140] sm:$0xff] %vm371, 0.0
          %626 = vst.msk [vmem:[#allocation2 + $0x148] sm:$0xff] %vm371, 0.0
          %627 = vst.msk [vmem:[#allocation2 + $0x150] sm:$0xff] %vm371, 0.0
          %628 = vst.msk [vmem:[#allocation2 + $0x158] sm:$0xff] %vm371, 0.0
          %629 = vst.msk [vmem:[#allocation2 + $0x160] sm:$0xff] %vm371, 0.0
          %630 = vst.msk [vmem:[#allocation2 + $0x168] sm:$0xff] %vm371, 0.0
          %631 = vst.msk [vmem:[#allocation2 + $0x170] sm:$0xff] %vm371, 0.0
          %632 = vst.msk [vmem:[#allocation2 + $0x178] sm:$0xff] %vm371, 0.0
          %633 = vst.msk [vmem:[#allocation2 + $0x180] sm:$0xff] %vm371, 0.0
          %634 = vst.msk [vmem:[#allocation2 + $0x188] sm:$0xff] %vm371, 0.0
          %635 = vst.msk [vmem:[#allocation2 + $0x190] sm:$0xff] %vm371, 0.0
          %636 = vst.msk [vmem:[#allocation2 + $0x198] sm:$0xff] %vm371, 0.0
          %637 = vst.msk [vmem:[#allocation2 + $0x1a0] sm:$0xff] %vm371, 0.0
          %638 = vst.msk [vmem:[#allocation2 + $0x1a8] sm:$0xff] %vm371, 0.0
          %639 = vst.msk [vmem:[#allocation2 + $0x1b0] sm:$0xff] %vm371, 0.0
          %640 = vst.msk [vmem:[#allocation2 + $0x1b8] sm:$0xff] %vm371, 0.0
          %641 = vst.msk [vmem:[#allocation2 + $0x1c0] sm:$0xff] %vm371, 0.0
          %642 = vst.msk [vmem:[#allocation2 + $0x1c8] sm:$0xff] %vm371, 0.0
          %643 = vst.msk [vmem:[#allocation2 + $0x1d0] sm:$0xff] %vm371, 0.0
          %644 = vst.msk [vmem:[#allocation2 + $0x1d8] sm:$0xff] %vm371, 0.0
          %645 = vst.msk [vmem:[#allocation2 + $0x1e0] sm:$0xff] %vm371, 0.0
          %646 = vst.msk [vmem:[#allocation2 + $0x1e8] sm:$0xff] %vm371, 0.0
          %647 = vst.msk [vmem:[#allocation2 + $0x1f0] sm:$0xff] %vm371, 0.0
          %648 = vst.msk [vmem:[#allocation2 + $0x1f8] sm:$0xff] %vm371, 0.0
          %649 = vst.msk [vmem:[#allocation2 + $0x200] sm:$0xff] %vm371, 0.0
          %650 = vst.msk [vmem:[#allocation2 + $0x208] sm:$0xff] %vm371, 0.0
          %651 = vst.msk [vmem:[#allocation2 + $0x210] sm:$0xff] %vm371, 0.0
          %652 = vst.msk [vmem:[#allocation2 + $0x218] sm:$0xff] %vm371, 0.0
          %653 = vst.msk [vmem:[#allocation2 + $0x220] sm:$0xff] %vm371, 0.0
          %654 = vst.msk [vmem:[#allocation2 + $0x228] sm:$0xff] %vm371, 0.0
          %655 = vst.msk [vmem:[#allocation2 + $0x230] sm:$0xff] %vm371, 0.0
          %656 = vst.msk [vmem:[#allocation2 + $0x238] sm:$0xff] %vm371, 0.0
        $region52: #{tpu_custom_call.1} parent=35 // pred_fallthru
          _
        %s657 = scalar_lea.vmem [#allocation2], 32
        %658 = vst.msk [vmem:[%s657 + $0x8] sm:$0xff] %vm371, %v486
        %659 = vst.msk [vmem:[%s657 + $0x10] sm:$0xff] %vm371, %v489
        %660 = vst.msk [vmem:[%s657 + $0x28] sm:$0xff] %vm371, %v492
        %661 = vst.msk [vmem:[%s657 + $0x30] sm:$0xff] %vm371, %v495
        %662 = vst.msk [vmem:[%s657 + $0x48] sm:$0xff] %vm371, %v498
        %663 = vst.msk [vmem:[%s657 + $0x50] sm:$0xff] %vm371, %v501
        %664 = vst.msk [vmem:[%s657 + $0x68] sm:$0xff] %vm371, %v504
        %665 = vst.msk [vmem:[%s657 + $0x70] sm:$0xff] %vm371, %v507
        %666 = vst.msk [vmem:[%s657 + $0x88] sm:$0xff] %vm371, %v510
        %667 = vst.msk [vmem:[%s657 + $0x90] sm:$0xff] %vm371, %v513
        %668 = vst.msk [vmem:[%s657 + $0xa8] sm:$0xff] %vm371, %v516
        %669 = vst.msk [vmem:[%s657 + $0xb0] sm:$0xff] %vm371, %v519
        %670 = vst.msk [vmem:[%s657 + $0xc8] sm:$0xff] %vm371, %v522
        %671 = vst.msk [vmem:[%s657 + $0xd0] sm:$0xff] %vm371, %v525
        %672 = vst.msk [vmem:[%s657 + $0xe8] sm:$0xff] %vm371, %v528
        %673 = vst.msk [vmem:[%s657 + $0xf0] sm:$0xff] %vm371, %v531
        %674 = vst.msk [vmem:[%s657 + $0x108] sm:$0xff] %vm371, %v534
        %675 = vst.msk [vmem:[%s657 + $0x110] sm:$0xff] %vm371, %v537
        %676 = vst.msk [vmem:[%s657 + $0x128] sm:$0xff] %vm371, %v540
        %677 = vst.msk [vmem:[%s657 + $0x130] sm:$0xff] %vm371, %v543
        %678 = vst.msk [vmem:[%s657 + $0x148] sm:$0xff] %vm371, %v546
        %679 = vst.msk [vmem:[%s657 + $0x150] sm:$0xff] %vm371, %v549
        %680 = vst.msk [vmem:[%s657 + $0x168] sm:$0xff] %vm371, %v552
        %681 = vst.msk [vmem:[%s657 + $0x170] sm:$0xff] %vm371, %v555
        %682 = vst.msk [vmem:[%s657 + $0x188] sm:$0xff] %vm371, %v558
        %683 = vst.msk [vmem:[%s657 + $0x190] sm:$0xff] %vm371, %v561
        %684 = vst.msk [vmem:[%s657 + $0x1a8] sm:$0xff] %vm371, %v564
        %685 = vst.msk [vmem:[%s657 + $0x1b0] sm:$0xff] %vm371, %v567
        %686 = vst.msk [vmem:[%s657 + $0x1c8] sm:$0xff] %vm371, %v570
        %687 = vst.msk [vmem:[%s657 + $0x1d0] sm:$0xff] %vm371, %v573
        %688 = vst.msk [vmem:[%s657 + $0x1e8] sm:$0xff] %vm371, %v576
        %689 = vst.msk [vmem:[%s657 + $0x1f0] sm:$0xff] %vm371, %v579
        %v690 = vld [vmem:[#allocation8] sm:$0xff]
        %v691 = vld [vmem:[#allocation8 + $0x8] sm:$0x1]
        %v692 = vld [vmem:[%s3] sm:$0x1]
        %v694 = vperm.slane %v692, 0
        %v696 = vadd.f32 %v321, %v694
        %v697 = vadd.f32 %v322, %v694
        %v698 = vadd.f32 %v323, %v694
        %v699 = vadd.f32 %v324, %v694
        %v700 = vadd.f32 %v325, %v694
        %v701 = vadd.f32 %v326, %v694
        %v702 = vadd.f32 %v327, %v694
        %v703 = vadd.f32 %v328, %v694
        %v704 = vadd.f32 %v329, %v694
        %v705 = vadd.f32 %v330, %v694
        %v706 = vadd.f32 %v331, %v694
        %v707 = vadd.f32 %v332, %v694
        %v708 = vadd.f32 %v333, %v694
        %v709 = vadd.f32 %v334, %v694
        %v710 = vadd.f32 %v335, %v694
        %v711 = vadd.f32 %v336, %v694
        %v712 = vadd.f32 %v353, %v694
        %v713 = vadd.f32 %v354, %v694
        %v714 = vadd.f32 %v355, %v694
        %v715 = vadd.f32 %v356, %v694
        %v716 = vadd.f32 %v357, %v694
        %v717 = vadd.f32 %v358, %v694
        %v718 = vadd.f32 %v359, %v694
        %v719 = vadd.f32 %v360, %v694
        %v720 = vadd.f32 %v361, %v694
        %v721 = vadd.f32 %v362, %v694
        %v722 = vadd.f32 %v363, %v694
        %v723 = vadd.f32 %v364, %v694
        %v724 = vadd.f32 %v365, %v694
        %v725 = vadd.f32 %v366, %v694
        %v726 = vadd.f32 %v367, %v694
        %v727 = vadd.f32 %v368, %v694
        %v728 = vld [vmem:[#allocation2 + $0x7] sm:$0xff]
        %v729 = vld [vmem:[#allocation2 + $0xf] sm:$0xff]
        %v730 = vld [vmem:[#allocation2 + $0x27] sm:$0xff]
        %v731 = vld [vmem:[#allocation2 + $0x2f] sm:$0xff]
        %v732 = vld [vmem:[#allocation2 + $0x47] sm:$0xff]
        %v733 = vld [vmem:[#allocation2 + $0x4f] sm:$0xff]
        %v734 = vld [vmem:[#allocation2 + $0x67] sm:$0xff]
        %v735 = vld [vmem:[#allocation2 + $0x6f] sm:$0xff]
        %v736 = vld [vmem:[#allocation2 + $0x87] sm:$0xff]
        %v737 = vld [vmem:[#allocation2 + $0x8f] sm:$0xff]
        %v738 = vld [vmem:[#allocation2 + $0xa7] sm:$0xff]
        %v739 = vld [vmem:[#allocation2 + $0xaf] sm:$0xff]
        %v740 = vld [vmem:[#allocation2 + $0xc7] sm:$0xff]
        %v741 = vld [vmem:[#allocation2 + $0xcf] sm:$0xff]
        %v742 = vld [vmem:[#allocation2 + $0xe7] sm:$0xff]
        %v743 = vld [vmem:[#allocation2 + $0xef] sm:$0xff]
        %v744 = vld [vmem:[#allocation2 + $0x107] sm:$0xff]
        %v745 = vld [vmem:[#allocation2 + $0x10f] sm:$0xff]
        %v746 = vld [vmem:[#allocation2 + $0x127] sm:$0xff]
        %v747 = vld [vmem:[#allocation2 + $0x12f] sm:$0xff]
        %v748 = vld [vmem:[#allocation2 + $0x147] sm:$0xff]
        %v749 = vld [vmem:[#allocation2 + $0x14f] sm:$0xff]
        %v750 = vld [vmem:[#allocation2 + $0x167] sm:$0xff]
        %v751 = vld [vmem:[#allocation2 + $0x16f] sm:$0xff]
        %v752 = vld [vmem:[#allocation2 + $0x187] sm:$0xff]
        %v753 = vld [vmem:[#allocation2 + $0x18f] sm:$0xff]
        %v754 = vld [vmem:[#allocation2 + $0x1a7] sm:$0xff]
        %v755 = vld [vmem:[#allocation2 + $0x1af] sm:$0xff]
        %v756 = vld [vmem:[#allocation2 + $0x1c7] sm:$0xff]
        %v757 = vld [vmem:[#allocation2 + $0x1cf] sm:$0xff]
        %v758 = vld [vmem:[#allocation2 + $0x1e7] sm:$0xff]
        %v759 = vld [vmem:[#allocation2 + $0x1ef] sm:$0xff]
        %v760 = vld [vmem:[#allocation2 + $0x207] sm:$0xff]
        %v761 = vld [vmem:[#allocation2 + $0x20f] sm:$0xff]
        %v762 = vld [vmem:[#allocation2 + $0x227] sm:$0xff]
        %v763 = vld [vmem:[#allocation2 + $0x22f] sm:$0xff]
        %v764 = vperm.slane %v690, 0
        %v765 = vmul.f32 %v728, %v764
        %v766 = vmul.f32 %v729, %v764
        %v767 = vmul.f32 %v730, %v764
        %v768 = vmul.f32 %v731, %v764
        %v769 = vmul.f32 %v732, %v764
        %v770 = vmul.f32 %v733, %v764
        %v771 = vmul.f32 %v734, %v764
        %v772 = vmul.f32 %v735, %v764
        %v773 = vmul.f32 %v736, %v764
        %v774 = vmul.f32 %v737, %v764
        %v775 = vmul.f32 %v738, %v764
        %v776 = vmul.f32 %v739, %v764
        %v777 = vmul.f32 %v740, %v764
        %v778 = vmul.f32 %v741, %v764
        %v779 = vmul.f32 %v742, %v764
        %v780 = vmul.f32 %v743, %v764
        %v781 = vmul.f32 %v744, %v764
        %v782 = vmul.f32 %v745, %v764
        %v783 = vmul.f32 %v746, %v764
        %v784 = vmul.f32 %v747, %v764
        %v785 = vmul.f32 %v748, %v764
        %v786 = vmul.f32 %v749, %v764
        %v787 = vmul.f32 %v750, %v764
        %v788 = vmul.f32 %v751, %v764
        %v789 = vmul.f32 %v752, %v764
        %v790 = vmul.f32 %v753, %v764
        %v791 = vmul.f32 %v754, %v764
        %v792 = vmul.f32 %v755, %v764
        %v793 = vmul.f32 %v756, %v764
        %v794 = vmul.f32 %v757, %v764
        %v795 = vmul.f32 %v758, %v764
        %v796 = vmul.f32 %v759, %v764
        %v797 = vadd.f32 %v696, %v765
        %v798 = vadd.f32 %v697, %v766
        %v799 = vadd.f32 %v698, %v767
        %v800 = vadd.f32 %v699, %v768
        %v801 = vadd.f32 %v700, %v769
        %v802 = vadd.f32 %v701, %v770
        %v803 = vadd.f32 %v702, %v771
        %v804 = vadd.f32 %v703, %v772
        %v805 = vadd.f32 %v704, %v773
        %v806 = vadd.f32 %v705, %v774
        %v807 = vadd.f32 %v706, %v775
        %v808 = vadd.f32 %v707, %v776
        %v809 = vadd.f32 %v708, %v777
        %v810 = vadd.f32 %v709, %v778
        %v811 = vadd.f32 %v710, %v779
        %v812 = vadd.f32 %v711, %v780
        %v813 = vadd.f32 %v712, %v781
        %v814 = vadd.f32 %v713, %v782
        %v815 = vadd.f32 %v714, %v783
        %v816 = vadd.f32 %v715, %v784
        %v817 = vadd.f32 %v716, %v785
        %v818 = vadd.f32 %v717, %v786
        %v819 = vadd.f32 %v718, %v787
        %v820 = vadd.f32 %v719, %v788
        %v821 = vadd.f32 %v720, %v789
        %v822 = vadd.f32 %v721, %v790
        %v823 = vadd.f32 %v722, %v791
        %v824 = vadd.f32 %v723, %v792
        %v825 = vadd.f32 %v724, %v793
        %v826 = vadd.f32 %v725, %v794
        %v827 = vadd.f32 %v726, %v795
        %v828 = vadd.f32 %v727, %v796
        %v829 = vperm.slane %v690, 3
        %v830 = vmul.f32 %v730, %v829
        %v831 = vmul.f32 %v731, %v829
        %v832 = vmul.f32 %v732, %v829
        %v833 = vmul.f32 %v733, %v829
        %v834 = vmul.f32 %v734, %v829
        %v835 = vmul.f32 %v735, %v829
        %v836 = vmul.f32 %v736, %v829
        %v837 = vmul.f32 %v737, %v829
        %v838 = vmul.f32 %v738, %v829
        %v839 = vmul.f32 %v739, %v829
        %v840 = vmul.f32 %v740, %v829
        %v841 = vmul.f32 %v741, %v829
        %v842 = vmul.f32 %v742, %v829
        %v843 = vmul.f32 %v743, %v829
        %v844 = vmul.f32 %v744, %v829
        %v845 = vmul.f32 %v745, %v829
        %v846 = vmul.f32 %v746, %v829
        %v847 = vmul.f32 %v747, %v829
        %v848 = vmul.f32 %v748, %v829
        %v849 = vmul.f32 %v749, %v829
        %v850 = vmul.f32 %v750, %v829
        %v851 = vmul.f32 %v751, %v829
        %v852 = vmul.f32 %v752, %v829
        %v853 = vmul.f32 %v753, %v829
        %v854 = vmul.f32 %v754, %v829
        %v855 = vmul.f32 %v755, %v829
        %v856 = vmul.f32 %v756, %v829
        %v857 = vmul.f32 %v757, %v829
        %v858 = vmul.f32 %v758, %v829
        %v859 = vmul.f32 %v759, %v829
        %v860 = vmul.f32 %v760, %v829
        %v861 = vmul.f32 %v761, %v829
        %v862 = vadd.f32 %v797, %v830
        %v863 = vadd.f32 %v798, %v831
        %v864 = vadd.f32 %v799, %v832
        %v865 = vadd.f32 %v800, %v833
        %v866 = vadd.f32 %v801, %v834
        %v867 = vadd.f32 %v802, %v835
        %v868 = vadd.f32 %v803, %v836
        %v869 = vadd.f32 %v804, %v837
        %v870 = vadd.f32 %v805, %v838
        %v871 = vadd.f32 %v806, %v839
        %v872 = vadd.f32 %v807, %v840
        %v873 = vadd.f32 %v808, %v841
        %v874 = vadd.f32 %v809, %v842
        %v875 = vadd.f32 %v810, %v843
        %v876 = vadd.f32 %v811, %v844
        %v877 = vadd.f32 %v812, %v845
        %v878 = vadd.f32 %v813, %v846
        %v879 = vadd.f32 %v814, %v847
        %v880 = vadd.f32 %v815, %v848
        %v881 = vadd.f32 %v816, %v849
        %v882 = vadd.f32 %v817, %v850
        %v883 = vadd.f32 %v818, %v851
        %v884 = vadd.f32 %v819, %v852
        %v885 = vadd.f32 %v820, %v853
        %v886 = vadd.f32 %v821, %v854
        %v887 = vadd.f32 %v822, %v855
        %v888 = vadd.f32 %v823, %v856
        %v889 = vadd.f32 %v824, %v857
        %v890 = vadd.f32 %v825, %v858
        %v891 = vadd.f32 %v826, %v859
        %v892 = vadd.f32 %v827, %v860
        %v893 = vadd.f32 %v828, %v861
        %v894 = vperm.slane %v690, 6
        %v895 = vmul.f32 %v732, %v894
        %v896 = vmul.f32 %v733, %v894
        %v897 = vmul.f32 %v734, %v894
        %v898 = vmul.f32 %v735, %v894
        %v899 = vmul.f32 %v736, %v894
        %v900 = vmul.f32 %v737, %v894
        %v901 = vmul.f32 %v738, %v894
        %v902 = vmul.f32 %v739, %v894
        %v903 = vmul.f32 %v740, %v894
        %v904 = vmul.f32 %v741, %v894
        %v905 = vmul.f32 %v742, %v894
        %v906 = vmul.f32 %v743, %v894
        %v907 = vmul.f32 %v744, %v894
        %v908 = vmul.f32 %v745, %v894
        %v909 = vmul.f32 %v746, %v894
        %v910 = vmul.f32 %v747, %v894
        %v911 = vmul.f32 %v748, %v894
        %v912 = vmul.f32 %v749, %v894
        %v913 = vmul.f32 %v750, %v894
        %v914 = vmul.f32 %v751, %v894
        %v915 = vmul.f32 %v752, %v894
        %v916 = vmul.f32 %v753, %v894
        %v917 = vmul.f32 %v754, %v894
        %v918 = vmul.f32 %v755, %v894
        %v919 = vmul.f32 %v756, %v894
        %v920 = vmul.f32 %v757, %v894
        %v921 = vmul.f32 %v758, %v894
        %v922 = vmul.f32 %v759, %v894
        %v923 = vmul.f32 %v760, %v894
        %v924 = vmul.f32 %v761, %v894
        %v925 = vmul.f32 %v762, %v894
        %v926 = vmul.f32 %v763, %v894
        %v927 = vadd.f32 %v862, %v895
        %v928 = vadd.f32 %v863, %v896
        %v929 = vadd.f32 %v864, %v897
        %v930 = vadd.f32 %v865, %v898
        %v931 = vadd.f32 %v866, %v899
        %v932 = vadd.f32 %v867, %v900
        %v933 = vadd.f32 %v868, %v901
        %v934 = vadd.f32 %v869, %v902
        %v935 = vadd.f32 %v870, %v903
        %v936 = vadd.f32 %v871, %v904
        %v937 = vadd.f32 %v872, %v905
        %v938 = vadd.f32 %v873, %v906
        %v939 = vadd.f32 %v874, %v907
        %v940 = vadd.f32 %v875, %v908
        %v941 = vadd.f32 %v876, %v909
        %v942 = vadd.f32 %v877, %v910
        %v943 = vadd.f32 %v878, %v911
        %v944 = vadd.f32 %v879, %v912
        %v945 = vadd.f32 %v880, %v913
        %v946 = vadd.f32 %v881, %v914
        %v947 = vadd.f32 %v882, %v915
        %v948 = vadd.f32 %v883, %v916
        %v949 = vadd.f32 %v884, %v917
        %v950 = vadd.f32 %v885, %v918
        %v951 = vadd.f32 %v886, %v919
        %v952 = vadd.f32 %v887, %v920
        %v953 = vadd.f32 %v888, %v921
        %v954 = vadd.f32 %v889, %v922
        %v955 = vadd.f32 %v890, %v923
        %v956 = vadd.f32 %v891, %v924
        %v957 = vadd.f32 %v892, %v925
        %v958 = vadd.f32 %v893, %v926
        %v959 = vld [vmem:[#allocation2 + $0x8] sm:$0xff]
        %v960 = vld [vmem:[#allocation2 + $0x10] sm:$0xff]
        %v961 = vld [vmem:[#allocation2 + $0x28] sm:$0xff]
        %v962 = vld [vmem:[#allocation2 + $0x30] sm:$0xff]
        %v963 = vld [vmem:[#allocation2 + $0x48] sm:$0xff]
        %v964 = vld [vmem:[#allocation2 + $0x50] sm:$0xff]
        %v965 = vld [vmem:[#allocation2 + $0x68] sm:$0xff]
        %v966 = vld [vmem:[#allocation2 + $0x70] sm:$0xff]
        %v967 = vld [vmem:[#allocation2 + $0x88] sm:$0xff]
        %v968 = vld [vmem:[#allocation2 + $0x90] sm:$0xff]
        %v969 = vld [vmem:[#allocation2 + $0xa8] sm:$0xff]
        %v970 = vld [vmem:[#allocation2 + $0xb0] sm:$0xff]
        %v971 = vld [vmem:[#allocation2 + $0xc8] sm:$0xff]
        %v972 = vld [vmem:[#allocation2 + $0xd0] sm:$0xff]
        %v973 = vld [vmem:[#allocation2 + $0xe8] sm:$0xff]
        %v974 = vld [vmem:[#allocation2 + $0xf0] sm:$0xff]
        %v975 = vld [vmem:[#allocation2 + $0x108] sm:$0xff]
        %v976 = vld [vmem:[#allocation2 + $0x110] sm:$0xff]
        %v977 = vld [vmem:[#allocation2 + $0x128] sm:$0xff]
        %v978 = vld [vmem:[#allocation2 + $0x130] sm:$0xff]
        %v979 = vld [vmem:[#allocation2 + $0x148] sm:$0xff]
        %v980 = vld [vmem:[#allocation2 + $0x150] sm:$0xff]
        %v981 = vld [vmem:[#allocation2 + $0x168] sm:$0xff]
        %v982 = vld [vmem:[#allocation2 + $0x170] sm:$0xff]
        %v983 = vld [vmem:[#allocation2 + $0x188] sm:$0xff]
        %v984 = vld [vmem:[#allocation2 + $0x190] sm:$0xff]
        %v985 = vld [vmem:[#allocation2 + $0x1a8] sm:$0xff]
        %v986 = vld [vmem:[#allocation2 + $0x1b0] sm:$0xff]
        %v987 = vld [vmem:[#allocation2 + $0x1c8] sm:$0xff]
        %v988 = vld [vmem:[#allocation2 + $0x1d0] sm:$0xff]
        %v989 = vld [vmem:[#allocation2 + $0x1e8] sm:$0xff]
        %v990 = vld [vmem:[#allocation2 + $0x1f0] sm:$0xff]
        %v991 = vld [vmem:[#allocation2 + $0x208] sm:$0xff]
        %v992 = vld [vmem:[#allocation2 + $0x210] sm:$0xff]
        %v993 = vld [vmem:[#allocation2 + $0x228] sm:$0xff]
        %v994 = vld [vmem:[#allocation2 + $0x230] sm:$0xff]
        %v995 = vperm.slane %v690, 1
        %v996 = vmul.f32 %v959, %v995
        %v997 = vmul.f32 %v960, %v995
        %v998 = vmul.f32 %v961, %v995
        %v999 = vmul.f32 %v962, %v995
        %v1000 = vmul.f32 %v963, %v995
        %v1001 = vmul.f32 %v964, %v995
        %v1002 = vmul.f32 %v965, %v995
        %v1003 = vmul.f32 %v966, %v995
        %v1004 = vmul.f32 %v967, %v995
        %v1005 = vmul.f32 %v968, %v995
        %v1006 = vmul.f32 %v969, %v995
        %v1007 = vmul.f32 %v970, %v995
        %v1008 = vmul.f32 %v971, %v995
        %v1009 = vmul.f32 %v972, %v995
        %v1010 = vmul.f32 %v973, %v995
        %v1011 = vmul.f32 %v974, %v995
        %v1012 = vmul.f32 %v975, %v995
        %v1013 = vmul.f32 %v976, %v995
        %v1014 = vmul.f32 %v977, %v995
        %v1015 = vmul.f32 %v978, %v995
        %v1016 = vmul.f32 %v979, %v995
        %v1017 = vmul.f32 %v980, %v995
        %v1018 = vmul.f32 %v981, %v995
        %v1019 = vmul.f32 %v982, %v995
        %v1020 = vmul.f32 %v983, %v995
        %v1021 = vmul.f32 %v984, %v995
        %v1022 = vmul.f32 %v985, %v995
        %v1023 = vmul.f32 %v986, %v995
        %v1024 = vmul.f32 %v987, %v995
        %v1025 = vmul.f32 %v988, %v995
        %v1026 = vmul.f32 %v989, %v995
        %v1027 = vmul.f32 %v990, %v995
        %v1028 = vadd.f32 %v927, %v996
        %v1029 = vadd.f32 %v928, %v997
        %v1030 = vadd.f32 %v929, %v998
        %v1031 = vadd.f32 %v930, %v999
        %v1032 = vadd.f32 %v931, %v1000
        %v1033 = vadd.f32 %v932, %v1001
        %v1034 = vadd.f32 %v933, %v1002
        %v1035 = vadd.f32 %v934, %v1003
        %v1036 = vadd.f32 %v935, %v1004
        %v1037 = vadd.f32 %v936, %v1005
        %v1038 = vadd.f32 %v937, %v1006
        %v1039 = vadd.f32 %v938, %v1007
        %v1040 = vadd.f32 %v939, %v1008
        %v1041 = vadd.f32 %v940, %v1009
        %v1042 = vadd.f32 %v941, %v1010
        %v1043 = vadd.f32 %v942, %v1011
        %v1044 = vadd.f32 %v943, %v1012
        %v1045 = vadd.f32 %v944, %v1013
        %v1046 = vadd.f32 %v945, %v1014
        %v1047 = vadd.f32 %v946, %v1015
        %v1048 = vadd.f32 %v947, %v1016
        %v1049 = vadd.f32 %v948, %v1017
        %v1050 = vadd.f32 %v949, %v1018
        %v1051 = vadd.f32 %v950, %v1019
        %v1052 = vadd.f32 %v951, %v1020
        %v1053 = vadd.f32 %v952, %v1021
        %v1054 = vadd.f32 %v953, %v1022
        %v1055 = vadd.f32 %v954, %v1023
        %v1056 = vadd.f32 %v955, %v1024
        %v1057 = vadd.f32 %v956, %v1025
        %v1058 = vadd.f32 %v957, %v1026
        %v1059 = vadd.f32 %v958, %v1027
        %v1060 = vperm.slane %v690, 4
        %v1061 = vmul.f32 %v961, %v1060
        %v1062 = vmul.f32 %v962, %v1060
        %v1063 = vmul.f32 %v963, %v1060
        %v1064 = vmul.f32 %v964, %v1060
        %v1065 = vmul.f32 %v965, %v1060
        %v1066 = vmul.f32 %v966, %v1060
        %v1067 = vmul.f32 %v967, %v1060
        %v1068 = vmul.f32 %v968, %v1060
        %v1069 = vmul.f32 %v969, %v1060
        %v1070 = vmul.f32 %v970, %v1060
        %v1071 = vmul.f32 %v971, %v1060
        %v1072 = vmul.f32 %v972, %v1060
        %v1073 = vmul.f32 %v973, %v1060
        %v1074 = vmul.f32 %v974, %v1060
        %v1075 = vmul.f32 %v975, %v1060
        %v1076 = vmul.f32 %v976, %v1060
        %v1077 = vmul.f32 %v977, %v1060
        %v1078 = vmul.f32 %v978, %v1060
        %v1079 = vmul.f32 %v979, %v1060
        %v1080 = vmul.f32 %v980, %v1060
        %v1081 = vmul.f32 %v981, %v1060
        %v1082 = vmul.f32 %v982, %v1060
        %v1083 = vmul.f32 %v983, %v1060
        %v1084 = vmul.f32 %v984, %v1060
        %v1085 = vmul.f32 %v985, %v1060
        %v1086 = vmul.f32 %v986, %v1060
        %v1087 = vmul.f32 %v987, %v1060
        %v1088 = vmul.f32 %v988, %v1060
        %v1089 = vmul.f32 %v989, %v1060
        %v1090 = vmul.f32 %v990, %v1060
        %v1091 = vmul.f32 %v991, %v1060
        %v1092 = vmul.f32 %v992, %v1060
        %v1093 = vadd.f32 %v1028, %v1061
        %v1094 = vadd.f32 %v1029, %v1062
        %v1095 = vadd.f32 %v1030, %v1063
        %v1096 = vadd.f32 %v1031, %v1064
        %v1097 = vadd.f32 %v1032, %v1065
        %v1098 = vadd.f32 %v1033, %v1066
        %v1099 = vadd.f32 %v1034, %v1067
        %v1100 = vadd.f32 %v1035, %v1068
        %v1101 = vadd.f32 %v1036, %v1069
        %v1102 = vadd.f32 %v1037, %v1070
        %v1103 = vadd.f32 %v1038, %v1071
        %v1104 = vadd.f32 %v1039, %v1072
        %v1105 = vadd.f32 %v1040, %v1073
        %v1106 = vadd.f32 %v1041, %v1074
        %v1107 = vadd.f32 %v1042, %v1075
        %v1108 = vadd.f32 %v1043, %v1076
        %v1109 = vadd.f32 %v1044, %v1077
        %v1110 = vadd.f32 %v1045, %v1078
        %v1111 = vadd.f32 %v1046, %v1079
        %v1112 = vadd.f32 %v1047, %v1080
        %v1113 = vadd.f32 %v1048, %v1081
        %v1114 = vadd.f32 %v1049, %v1082
        %v1115 = vadd.f32 %v1050, %v1083
        %v1116 = vadd.f32 %v1051, %v1084
        %v1117 = vadd.f32 %v1052, %v1085
        %v1118 = vadd.f32 %v1053, %v1086
        %v1119 = vadd.f32 %v1054, %v1087
        %v1120 = vadd.f32 %v1055, %v1088
        %v1121 = vadd.f32 %v1056, %v1089
        %v1122 = vadd.f32 %v1057, %v1090
        %v1123 = vadd.f32 %v1058, %v1091
        %v1124 = vadd.f32 %v1059, %v1092
        %v1125 = vperm.slane %v690, 7
        %v1126 = vmul.f32 %v963, %v1125
        %v1127 = vmul.f32 %v964, %v1125
        %v1128 = vmul.f32 %v965, %v1125
        %v1129 = vmul.f32 %v966, %v1125
        %v1130 = vmul.f32 %v967, %v1125
        %v1131 = vmul.f32 %v968, %v1125
        %v1132 = vmul.f32 %v969, %v1125
        %v1133 = vmul.f32 %v970, %v1125
        %v1134 = vmul.f32 %v971, %v1125
        %v1135 = vmul.f32 %v972, %v1125
        %v1136 = vmul.f32 %v973, %v1125
        %v1137 = vmul.f32 %v974, %v1125
        %v1138 = vmul.f32 %v975, %v1125
        %v1139 = vmul.f32 %v976, %v1125
        %v1140 = vmul.f32 %v977, %v1125
        %v1141 = vmul.f32 %v978, %v1125
        %v1142 = vmul.f32 %v979, %v1125
        %v1143 = vmul.f32 %v980, %v1125
        %v1144 = vmul.f32 %v981, %v1125
        %v1145 = vmul.f32 %v982, %v1125
        %v1146 = vmul.f32 %v983, %v1125
        %v1147 = vmul.f32 %v984, %v1125
        %v1148 = vmul.f32 %v985, %v1125
        %v1149 = vmul.f32 %v986, %v1125
        %v1150 = vmul.f32 %v987, %v1125
        %v1151 = vmul.f32 %v988, %v1125
        %v1152 = vmul.f32 %v989, %v1125
        %v1153 = vmul.f32 %v990, %v1125
        %v1154 = vmul.f32 %v991, %v1125
        %v1155 = vmul.f32 %v992, %v1125
        %v1156 = vmul.f32 %v993, %v1125
        %v1157 = vmul.f32 %v994, %v1125
        %v1158 = vadd.f32 %v1093, %v1126
        %v1159 = vadd.f32 %v1094, %v1127
        %v1160 = vadd.f32 %v1095, %v1128
        %v1161 = vadd.f32 %v1096, %v1129
        %v1162 = vadd.f32 %v1097, %v1130
        %v1163 = vadd.f32 %v1098, %v1131
        %v1164 = vadd.f32 %v1099, %v1132
        %v1165 = vadd.f32 %v1100, %v1133
        %v1166 = vadd.f32 %v1101, %v1134
        %v1167 = vadd.f32 %v1102, %v1135
        %v1168 = vadd.f32 %v1103, %v1136
        %v1169 = vadd.f32 %v1104, %v1137
        %v1170 = vadd.f32 %v1105, %v1138
        %v1171 = vadd.f32 %v1106, %v1139
        %v1172 = vadd.f32 %v1107, %v1140
        %v1173 = vadd.f32 %v1108, %v1141
        %v1174 = vadd.f32 %v1109, %v1142
        %v1175 = vadd.f32 %v1110, %v1143
        %v1176 = vadd.f32 %v1111, %v1144
        %v1177 = vadd.f32 %v1112, %v1145
        %v1178 = vadd.f32 %v1113, %v1146
        %v1179 = vadd.f32 %v1114, %v1147
        %v1180 = vadd.f32 %v1115, %v1148
        %v1181 = vadd.f32 %v1116, %v1149
        %v1182 = vadd.f32 %v1117, %v1150
        %v1183 = vadd.f32 %v1118, %v1151
        %v1184 = vadd.f32 %v1119, %v1152
        %v1185 = vadd.f32 %v1120, %v1153
        %v1186 = vadd.f32 %v1121, %v1154
        %v1187 = vadd.f32 %v1122, %v1155
        %v1188 = vadd.f32 %v1123, %v1156
        %v1189 = vadd.f32 %v1124, %v1157
        %v1190 = vld [vmem:[#allocation2 + $0x9] sm:$0xff]
        %v1191 = vld [vmem:[#allocation2 + $0x11] sm:$0xff]
        %v1192 = vld [vmem:[#allocation2 + $0x29] sm:$0xff]
        %v1193 = vld [vmem:[#allocation2 + $0x31] sm:$0xff]
        %v1194 = vld [vmem:[#allocation2 + $0x49] sm:$0xff]
        %v1195 = vld [vmem:[#allocation2 + $0x51] sm:$0xff]
        %v1196 = vld [vmem:[#allocation2 + $0x69] sm:$0xff]
        %v1197 = vld [vmem:[#allocation2 + $0x71] sm:$0xff]
        %v1198 = vld [vmem:[#allocation2 + $0x89] sm:$0xff]
        %v1199 = vld [vmem:[#allocation2 + $0x91] sm:$0xff]
        %v1200 = vld [vmem:[#allocation2 + $0xa9] sm:$0xff]
        %v1201 = vld [vmem:[#allocation2 + $0xb1] sm:$0xff]
        %v1202 = vld [vmem:[#allocation2 + $0xc9] sm:$0xff]
        %v1203 = vld [vmem:[#allocation2 + $0xd1] sm:$0xff]
        %v1204 = vld [vmem:[#allocation2 + $0xe9] sm:$0xff]
        %v1205 = vld [vmem:[#allocation2 + $0xf1] sm:$0xff]
        %v1206 = vld [vmem:[#allocation2 + $0x109] sm:$0xff]
        %v1207 = vld [vmem:[#allocation2 + $0x111] sm:$0xff]
        %v1208 = vld [vmem:[#allocation2 + $0x129] sm:$0xff]
        %v1209 = vld [vmem:[#allocation2 + $0x131] sm:$0xff]
        %v1210 = vld [vmem:[#allocation2 + $0x149] sm:$0xff]
        %v1211 = vld [vmem:[#allocation2 + $0x151] sm:$0xff]
        %v1212 = vld [vmem:[#allocation2 + $0x169] sm:$0xff]
        %v1213 = vld [vmem:[#allocation2 + $0x171] sm:$0xff]
        %v1214 = vld [vmem:[#allocation2 + $0x189] sm:$0xff]
        %v1215 = vld [vmem:[#allocation2 + $0x191] sm:$0xff]
        %v1216 = vld [vmem:[#allocation2 + $0x1a9] sm:$0xff]
        %v1217 = vld [vmem:[#allocation2 + $0x1b1] sm:$0xff]
        %v1218 = vld [vmem:[#allocation2 + $0x1c9] sm:$0xff]
        %v1219 = vld [vmem:[#allocation2 + $0x1d1] sm:$0xff]
        %v1220 = vld [vmem:[#allocation2 + $0x1e9] sm:$0xff]
        %v1221 = vld [vmem:[#allocation2 + $0x1f1] sm:$0xff]
        %v1222 = vld [vmem:[#allocation2 + $0x209] sm:$0xff]
        %v1223 = vld [vmem:[#allocation2 + $0x211] sm:$0xff]
        %v1224 = vld [vmem:[#allocation2 + $0x229] sm:$0xff]
        %v1225 = vld [vmem:[#allocation2 + $0x231] sm:$0xff]
        %v1226 = vperm.slane %v690, 2
        %v1227 = vmul.f32 %v1190, %v1226
        %v1228 = vmul.f32 %v1191, %v1226
        %v1229 = vmul.f32 %v1192, %v1226
        %v1230 = vmul.f32 %v1193, %v1226
        %v1231 = vmul.f32 %v1194, %v1226
        %v1232 = vmul.f32 %v1195, %v1226
        %v1233 = vmul.f32 %v1196, %v1226
        %v1234 = vmul.f32 %v1197, %v1226
        %v1235 = vmul.f32 %v1198, %v1226
        %v1236 = vmul.f32 %v1199, %v1226
        %v1237 = vmul.f32 %v1200, %v1226
        %v1238 = vmul.f32 %v1201, %v1226
        %v1239 = vmul.f32 %v1202, %v1226
        %v1240 = vmul.f32 %v1203, %v1226
        %v1241 = vmul.f32 %v1204, %v1226
        %v1242 = vmul.f32 %v1205, %v1226
        %v1243 = vmul.f32 %v1206, %v1226
        %v1244 = vmul.f32 %v1207, %v1226
        %v1245 = vmul.f32 %v1208, %v1226
        %v1246 = vmul.f32 %v1209, %v1226
        %v1247 = vmul.f32 %v1210, %v1226
        %v1248 = vmul.f32 %v1211, %v1226
        %v1249 = vmul.f32 %v1212, %v1226
        %v1250 = vmul.f32 %v1213, %v1226
        %v1251 = vmul.f32 %v1214, %v1226
        %v1252 = vmul.f32 %v1215, %v1226
        %v1253 = vmul.f32 %v1216, %v1226
        %v1254 = vmul.f32 %v1217, %v1226
        %v1255 = vmul.f32 %v1218, %v1226
        %v1256 = vmul.f32 %v1219, %v1226
        %v1257 = vmul.f32 %v1220, %v1226
        %v1258 = vmul.f32 %v1221, %v1226
        %v1259 = vadd.f32 %v1158, %v1227
        %v1260 = vadd.f32 %v1159, %v1228
        %v1261 = vadd.f32 %v1160, %v1229
        %v1262 = vadd.f32 %v1161, %v1230
        %v1263 = vadd.f32 %v1162, %v1231
        %v1264 = vadd.f32 %v1163, %v1232
        %v1265 = vadd.f32 %v1164, %v1233
        %v1266 = vadd.f32 %v1165, %v1234
        %v1267 = vadd.f32 %v1166, %v1235
        %v1268 = vadd.f32 %v1167, %v1236
        %v1269 = vadd.f32 %v1168, %v1237
        %v1270 = vadd.f32 %v1169, %v1238
        %v1271 = vadd.f32 %v1170, %v1239
        %v1272 = vadd.f32 %v1171, %v1240
        %v1273 = vadd.f32 %v1172, %v1241
        %v1274 = vadd.f32 %v1173, %v1242
        %v1275 = vadd.f32 %v1174, %v1243
        %v1276 = vadd.f32 %v1175, %v1244
        %v1277 = vadd.f32 %v1176, %v1245
        %v1278 = vadd.f32 %v1177, %v1246
        %v1279 = vadd.f32 %v1178, %v1247
        %v1280 = vadd.f32 %v1179, %v1248
        %v1281 = vadd.f32 %v1180, %v1249
        %v1282 = vadd.f32 %v1181, %v1250
        %v1283 = vadd.f32 %v1182, %v1251
        %v1284 = vadd.f32 %v1183, %v1252
        %v1285 = vadd.f32 %v1184, %v1253
        %v1286 = vadd.f32 %v1185, %v1254
        %v1287 = vadd.f32 %v1186, %v1255
        %v1288 = vadd.f32 %v1187, %v1256
        %v1289 = vadd.f32 %v1188, %v1257
        %v1290 = vadd.f32 %v1189, %v1258
        %v1291 = vperm.slane %v690, 5
        %v1292 = vmul.f32 %v1192, %v1291
        %v1293 = vmul.f32 %v1193, %v1291
        %v1294 = vmul.f32 %v1194, %v1291
        %v1295 = vmul.f32 %v1195, %v1291
        %v1296 = vmul.f32 %v1196, %v1291
        %v1297 = vmul.f32 %v1197, %v1291
        %v1298 = vmul.f32 %v1198, %v1291
        %v1299 = vmul.f32 %v1199, %v1291
        %v1300 = vmul.f32 %v1200, %v1291
        %v1301 = vmul.f32 %v1201, %v1291
        %v1302 = vmul.f32 %v1202, %v1291
        %v1303 = vmul.f32 %v1203, %v1291
        %v1304 = vmul.f32 %v1204, %v1291
        %v1305 = vmul.f32 %v1205, %v1291
        %v1306 = vmul.f32 %v1206, %v1291
        %v1307 = vmul.f32 %v1207, %v1291
        %v1308 = vmul.f32 %v1208, %v1291
        %v1309 = vmul.f32 %v1209, %v1291
        %v1310 = vmul.f32 %v1210, %v1291
        %v1311 = vmul.f32 %v1211, %v1291
        %v1312 = vmul.f32 %v1212, %v1291
        %v1313 = vmul.f32 %v1213, %v1291
        %v1314 = vmul.f32 %v1214, %v1291
        %v1315 = vmul.f32 %v1215, %v1291
        %v1316 = vmul.f32 %v1216, %v1291
        %v1317 = vmul.f32 %v1217, %v1291
        %v1318 = vmul.f32 %v1218, %v1291
        %v1319 = vmul.f32 %v1219, %v1291
        %v1320 = vmul.f32 %v1220, %v1291
        %v1321 = vmul.f32 %v1221, %v1291
        %v1322 = vmul.f32 %v1222, %v1291
        %v1323 = vmul.f32 %v1223, %v1291
        %v1324 = vadd.f32 %v1259, %v1292
        %v1325 = vadd.f32 %v1260, %v1293
        %v1326 = vadd.f32 %v1261, %v1294
        %v1327 = vadd.f32 %v1262, %v1295
        %v1328 = vadd.f32 %v1263, %v1296
        %v1329 = vadd.f32 %v1264, %v1297
        %v1330 = vadd.f32 %v1265, %v1298
        %v1331 = vadd.f32 %v1266, %v1299
        %v1332 = vadd.f32 %v1267, %v1300
        %v1333 = vadd.f32 %v1268, %v1301
        %v1334 = vadd.f32 %v1269, %v1302
        %v1335 = vadd.f32 %v1270, %v1303
        %v1336 = vadd.f32 %v1271, %v1304
        %v1337 = vadd.f32 %v1272, %v1305
        %v1338 = vadd.f32 %v1273, %v1306
        %v1339 = vadd.f32 %v1274, %v1307
        %v1340 = vadd.f32 %v1275, %v1308
        %v1341 = vadd.f32 %v1276, %v1309
        %v1342 = vadd.f32 %v1277, %v1310
        %v1343 = vadd.f32 %v1278, %v1311
        %v1344 = vadd.f32 %v1279, %v1312
        %v1345 = vadd.f32 %v1280, %v1313
        %v1346 = vadd.f32 %v1281, %v1314
        %v1347 = vadd.f32 %v1282, %v1315
        %v1348 = vadd.f32 %v1283, %v1316
        %v1349 = vadd.f32 %v1284, %v1317
        %v1350 = vadd.f32 %v1285, %v1318
        %v1351 = vadd.f32 %v1286, %v1319
        %v1352 = vadd.f32 %v1287, %v1320
        %v1353 = vadd.f32 %v1288, %v1321
        %v1354 = vadd.f32 %v1289, %v1322
        %v1355 = vadd.f32 %v1290, %v1323
        %v1356 = vperm.slane %v691, 0
        %v1357 = vmul.f32 %v1194, %v1356
        %v1358 = vmul.f32 %v1195, %v1356
        %v1359 = vmul.f32 %v1196, %v1356
        %v1360 = vmul.f32 %v1197, %v1356
        %v1361 = vmul.f32 %v1198, %v1356
        %v1362 = vmul.f32 %v1199, %v1356
        %v1363 = vmul.f32 %v1200, %v1356
        %v1364 = vmul.f32 %v1201, %v1356
        %v1365 = vmul.f32 %v1202, %v1356
        %v1366 = vmul.f32 %v1203, %v1356
        %v1367 = vmul.f32 %v1204, %v1356
        %v1368 = vmul.f32 %v1205, %v1356
        %v1369 = vmul.f32 %v1206, %v1356
        %v1370 = vmul.f32 %v1207, %v1356
        %v1371 = vmul.f32 %v1208, %v1356
        %v1372 = vmul.f32 %v1209, %v1356
        %v1373 = vmul.f32 %v1210, %v1356
        %v1374 = vmul.f32 %v1211, %v1356
        %v1375 = vmul.f32 %v1212, %v1356
        %v1376 = vmul.f32 %v1213, %v1356
        %v1377 = vmul.f32 %v1214, %v1356
        %v1378 = vmul.f32 %v1215, %v1356
        %v1379 = vmul.f32 %v1216, %v1356
        %v1380 = vmul.f32 %v1217, %v1356
        %v1381 = vmul.f32 %v1218, %v1356
        %v1382 = vmul.f32 %v1219, %v1356
        %v1383 = vmul.f32 %v1220, %v1356
        %v1384 = vmul.f32 %v1221, %v1356
        %v1385 = vmul.f32 %v1222, %v1356
        %v1386 = vmul.f32 %v1223, %v1356
        %v1387 = vmul.f32 %v1224, %v1356
        %v1388 = vmul.f32 %v1225, %v1356
        %v1389 = vadd.f32 %v1324, %v1357
        %v1390 = vadd.f32 %v1325, %v1358
        %v1391 = vadd.f32 %v1326, %v1359
        %v1392 = vadd.f32 %v1327, %v1360
        %v1393 = vadd.f32 %v1328, %v1361
        %v1394 = vadd.f32 %v1329, %v1362
        %v1395 = vadd.f32 %v1330, %v1363
        %v1396 = vadd.f32 %v1331, %v1364
        %v1397 = vadd.f32 %v1332, %v1365
        %v1398 = vadd.f32 %v1333, %v1366
        %v1399 = vadd.f32 %v1334, %v1367
        %v1400 = vadd.f32 %v1335, %v1368
        %v1401 = vadd.f32 %v1336, %v1369
        %v1402 = vadd.f32 %v1337, %v1370
        %v1403 = vadd.f32 %v1338, %v1371
        %v1404 = vadd.f32 %v1339, %v1372
        %v1405 = vadd.f32 %v1340, %v1373
        %v1406 = vadd.f32 %v1341, %v1374
        %v1407 = vadd.f32 %v1342, %v1375
        %v1408 = vadd.f32 %v1343, %v1376
        %v1409 = vadd.f32 %v1344, %v1377
        %v1410 = vadd.f32 %v1345, %v1378
        %v1411 = vadd.f32 %v1346, %v1379
        %v1412 = vadd.f32 %v1347, %v1380
        %v1413 = vadd.f32 %v1348, %v1381
        %v1414 = vadd.f32 %v1349, %v1382
        %v1415 = vadd.f32 %v1350, %v1383
        %v1416 = vadd.f32 %v1351, %v1384
        %v1417 = vadd.f32 %v1352, %v1385
        %v1418 = vadd.f32 %v1353, %v1386
        %v1419 = vadd.f32 %v1354, %v1387
        %v1420 = vadd.f32 %v1355, %v1388
        // Predicated region
        $region53: #{tpu_custom_call.1} parent=35 // pred_check
          %p1421 = pneg %p581
        $region54: #{tpu_custom_call.1} parent=35 // pred_check_branch
          %1423 = sbr.rel (%p1421) target = $region56
        $region55: #{tpu_custom_call.1} parent=35 // pred_region
          %vm1424 = vcmask 122880
          %1425 = vst.msk [vmem:[#allocation10] sm:$0x1] %vm1424, 0.0
          %1426 = vst.msk [vmem:[#allocation12] sm:$0x1] %vm1424, 0.0
        $region56: #{tpu_custom_call.1} parent=35 // pred_fallthru
          _
        %v1427 = vld [vmem:[#allocation10] sm:$0x1]
        %1428 = vmatpush.msra.mxu0 %v1404
        %1429 = vmatpush.msra.mxu0 %v1403
        %1430 = vmatpush.msra.mxu0 %v1402
        %1431 = vmatpush.msra.mxu0 %v1401
        %1432 = vmatpush.msra.mxu0 %v1400
        %1433 = vmatpush.msra.mxu0 %v1399
        %1434 = vmatpush.msra.mxu0 %v1398
        %1435 = vmatpush.msra.mxu0 %v1397
        %1436 = vmatpush.msra.mxu0 %v1396
        %1437 = vmatpush.msra.mxu0 %v1395
        %1438 = vmatpush.msra.mxu0 %v1394
        %1439 = vmatpush.msra.mxu0 %v1393
        %1440 = vmatpush.msra.mxu0 %v1392
        %1441 = vmatpush.msra.mxu0 %v1391
        %1442 = vmatpush.msra.mxu0 %v1390
        %1443 = vmatpush.msra.mxu0 %v1389
        %1444 = vmatmul.f32.gmra.mxu0 1.0
        %v1445 = vpop.f32.mrf.mxu0
        %v1446 = vadd.f32 0.0, %v1445
        %1447 = vdwg.mxu0
        %1448 = vmatpush.msra.mxu0 %v1420
        %1449 = vmatpush.msra.mxu0 %v1419
        %1450 = vmatpush.msra.mxu0 %v1418
        %1451 = vmatpush.msra.mxu0 %v1417
        %1452 = vmatpush.msra.mxu0 %v1416
        %1453 = vmatpush.msra.mxu0 %v1415
        %1454 = vmatpush.msra.mxu0 %v1414
        %1455 = vmatpush.msra.mxu0 %v1413
        %1456 = vmatpush.msra.mxu0 %v1412
        %1457 = vmatpush.msra.mxu0 %v1411
        %1458 = vmatpush.msra.mxu0 %v1410
        %1459 = vmatpush.msra.mxu0 %v1409
        %1460 = vmatpush.msra.mxu0 %v1408
        %1461 = vmatpush.msra.mxu0 %v1407
        %1462 = vmatpush.msra.mxu0 %v1406
        %1463 = vmatpush.msra.mxu0 %v1405
        %1464 = vmatmul.f32.gmra.mxu0 1.0
        %v1465 = vpop.f32.mrf.mxu0
        %v1466 = vadd.f32 %v1446, %v1465
        %1467 = vdwg.mxu0
        %v1468 = vadd.f32 %v1427, %v1466
        %vm1469 = vcmask 122880
        %1470 = vst.msk [vmem:[#allocation10] sm:$0x1] %vm1469, %v1468
        %v1471 = vld [vmem:[#allocation12] sm:$0x1]
        %v1472 = vmul.f32 %v1389, %v1389
        %v1473 = vmul.f32 %v1390, %v1390
        %v1474 = vmul.f32 %v1391, %v1391
        %v1475 = vmul.f32 %v1392, %v1392
        %v1476 = vmul.f32 %v1393, %v1393
        %v1477 = vmul.f32 %v1394, %v1394
        %v1478 = vmul.f32 %v1395, %v1395
        %v1479 = vmul.f32 %v1396, %v1396
        %v1480 = vmul.f32 %v1397, %v1397
        %v1481 = vmul.f32 %v1398, %v1398
        %v1482 = vmul.f32 %v1399, %v1399
        %v1483 = vmul.f32 %v1400, %v1400
        %v1484 = vmul.f32 %v1401, %v1401
        %v1485 = vmul.f32 %v1402, %v1402
        %v1486 = vmul.f32 %v1403, %v1403
        %v1487 = vmul.f32 %v1404, %v1404
        %v1488 = vmul.f32 %v1405, %v1405
        %v1489 = vmul.f32 %v1406, %v1406
        %v1490 = vmul.f32 %v1407, %v1407
        %v1491 = vmul.f32 %v1408, %v1408
        %v1492 = vmul.f32 %v1409, %v1409
        %v1493 = vmul.f32 %v1410, %v1410
        %v1494 = vmul.f32 %v1411, %v1411
        %v1495 = vmul.f32 %v1412, %v1412
        %v1496 = vmul.f32 %v1413, %v1413
        %v1497 = vmul.f32 %v1414, %v1414
        %v1498 = vmul.f32 %v1415, %v1415
        %v1499 = vmul.f32 %v1416, %v1416
        %v1500 = vmul.f32 %v1417, %v1417
        %v1501 = vmul.f32 %v1418, %v1418
        %v1502 = vmul.f32 %v1419, %v1419
        %v1503 = vmul.f32 %v1420, %v1420
        %1504 = vmatpush.msra.mxu0 %v1487
        %1505 = vmatpush.msra.mxu0 %v1486
        %1506 = vmatpush.msra.mxu0 %v1485
        %1507 = vmatpush.msra.mxu0 %v1484
        %1508 = vmatpush.msra.mxu0 %v1483
        %1509 = vmatpush.msra.mxu0 %v1482
        %1510 = vmatpush.msra.mxu0 %v1481
        %1511 = vmatpush.msra.mxu0 %v1480
        %1512 = vmatpush.msra.mxu0 %v1479
        %1513 = vmatpush.msra.mxu0 %v1478
        %1514 = vmatpush.msra.mxu0 %v1477
        %1515 = vmatpush.msra.mxu0 %v1476
        %1516 = vmatpush.msra.mxu0 %v1475
        %1517 = vmatpush.msra.mxu0 %v1474
        %1518 = vmatpush.msra.mxu0 %v1473
        %1519 = vmatpush.msra.mxu0 %v1472
        %1520 = vmatmul.f32.gmra.mxu0 1.0
        %v1521 = vpop.f32.mrf.mxu0
        %v1522 = vadd.f32 0.0, %v1521
        %1523 = vdwg.mxu0
        %1524 = vmatpush.msra.mxu0 %v1503
        %1525 = vmatpush.msra.mxu0 %v1502
        %1526 = vmatpush.msra.mxu0 %v1501
        %1527 = vmatpush.msra.mxu0 %v1500
        %1528 = vmatpush.msra.mxu0 %v1499
        %1529 = vmatpush.msra.mxu0 %v1498
        %1530 = vmatpush.msra.mxu0 %v1497
        %1531 = vmatpush.msra.mxu0 %v1496
        %1532 = vmatpush.msra.mxu0 %v1495
        %1533 = vmatpush.msra.mxu0 %v1494
        %1534 = vmatpush.msra.mxu0 %v1493
        %1535 = vmatpush.msra.mxu0 %v1492
        %1536 = vmatpush.msra.mxu0 %v1491
        %1537 = vmatpush.msra.mxu0 %v1490
        %1538 = vmatpush.msra.mxu0 %v1489
        %1539 = vmatpush.msra.mxu0 %v1488
        %1540 = vmatmul.f32.gmra.mxu0 1.0
        %v1541 = vpop.f32.mrf.mxu0
        %v1542 = vadd.f32 %v1522, %v1541
        %1543 = vdwg.mxu0
        %v1544 = vadd.f32 %v1471, %v1542
        %1545 = vst.msk [vmem:[#allocation12] sm:$0x1] %vm1469, %v1544
        %1546 = vxpose.xlu0.b32.start [1/16] %v1389, 128
        %1547 = vxpose.xlu0.b32.cont [2/16] %v1390, 128
        %1548 = vxpose.xlu0.b32.cont [3/16] %v1391, 128
        %1549 = vxpose.xlu0.b32.cont [4/16] %v1392, 128
        %1550 = vxpose.xlu0.b32.cont [5/16] %v1393, 128
        %1551 = vxpose.xlu0.b32.cont [6/16] %v1394, 128
        %1552 = vxpose.xlu0.b32.cont [7/16] %v1395, 128
        %1553 = vxpose.xlu0.b32.cont [8/16] %v1396, 128
        %1554 = vxpose.xlu0.b32.cont [9/16] %v1397, 128
        %1555 = vxpose.xlu0.b32.cont [10/16] %v1398, 128
        %1556 = vxpose.xlu0.b32.cont [11/16] %v1399, 128
        %1557 = vxpose.xlu0.b32.cont [12/16] %v1400, 128
        %1558 = vxpose.xlu0.b32.cont [13/16] %v1401, 128
        %1559 = vxpose.xlu0.b32.cont [14/16] %v1402, 128
        %1560 = vxpose.xlu0.b32.cont [15/16] %v1403, 128
        %1561 = vxpose.xlu0.b32.end [16/16] %v1404, 128
        %v1562 = vpop.trf.xlu0
        %v1563 = vpop.trf.xlu0
        %v1564 = vpop.trf.xlu0
        %v1565 = vpop.trf.xlu0
        %v1566 = vpop.trf.xlu0
        %v1567 = vpop.trf.xlu0
        %v1568 = vpop.trf.xlu0
        %v1569 = vpop.trf.xlu0
        %v1570 = vpop.trf.xlu0
        %v1571 = vpop.trf.xlu0
        %v1572 = vpop.trf.xlu0
        %v1573 = vpop.trf.xlu0
        %v1574 = vpop.trf.xlu0
        %v1575 = vpop.trf.xlu0
        %v1576 = vpop.trf.xlu0
        %v1577 = vpop.trf.xlu0
        %1578 = vxpose.xlu0.b32.start [1/16] %v1405, 128
        %1579 = vxpose.xlu0.b32.cont [2/16] %v1406, 128
        %1580 = vxpose.xlu0.b32.cont [3/16] %v1407, 128
        %1581 = vxpose.xlu0.b32.cont [4/16] %v1408, 128
        %1582 = vxpose.xlu0.b32.cont [5/16] %v1409, 128
        %1583 = vxpose.xlu0.b32.cont [6/16] %v1410, 128
        %1584 = vxpose.xlu0.b32.cont [7/16] %v1411, 128
        %1585 = vxpose.xlu0.b32.cont [8/16] %v1412, 128
        %1586 = vxpose.xlu0.b32.cont [9/16] %v1413, 128
        %1587 = vxpose.xlu0.b32.cont [10/16] %v1414, 128
        %1588 = vxpose.xlu0.b32.cont [11/16] %v1415, 128
        %1589 = vxpose.xlu0.b32.cont [12/16] %v1416, 128
        %1590 = vxpose.xlu0.b32.cont [13/16] %v1417, 128
        %1591 = vxpose.xlu0.b32.cont [14/16] %v1418, 128
        %1592 = vxpose.xlu0.b32.cont [15/16] %v1419, 128
        %1593 = vxpose.xlu0.b32.end [16/16] %v1420, 128
        %v1594 = vpop.trf.xlu0
        %v1595 = vpop.trf.xlu0
        %v1596 = vpop.trf.xlu0
        %v1597 = vpop.trf.xlu0
        %v1598 = vpop.trf.xlu0
        %v1599 = vpop.trf.xlu0
        %v1600 = vpop.trf.xlu0
        %v1601 = vpop.trf.xlu0
        %v1602 = vpop.trf.xlu0
        %v1603 = vpop.trf.xlu0
        %v1604 = vpop.trf.xlu0
        %v1605 = vpop.trf.xlu0
        %v1606 = vpop.trf.xlu0
        %v1607 = vpop.trf.xlu0
        %v1608 = vpop.trf.xlu0
        %v1609 = vpop.trf.xlu0
        %v1610 = vpack.c.bf16 %v1594, %v1562
        %v1611 = vpack.c.bf16 %v1595, %v1563
        %1612 = vst [vmem:[%s296] sm:$0xff] %v1610
        %1613 = vst [vmem:[%s296 + $0x8] sm:$0xff] %v1611
        %s1614 = sand.u32 %s123, 1
        %s1615 = scalar_lea.sflag [#allocation5], %s1614
        %s1616 = sand.u32 %s123, 1
        %s1617 = smul.addr %s1616, 16
        %s1618 = scalar_lea.vmem [#allocation9], %s1617
        // Predicated region
        $region57: #{tpu_custom_call.1} parent=35 // pred_check
          %p1619 = pneg %p133
        $region58: #{tpu_custom_call.1} parent=35 // pred_check_branch
          %1621 = sbr.rel (%p1619) target = $region60
        $region59: #{tpu_custom_call.1} parent=35 // pred_region
          %1623 = vsyncadd %s1615, 0
          %s1624 = smul.addr %s26, 4
          %s1625 = smul.addr %s1624, 4
          %s1626 = scalar_lea.hbm %s4, %s1625
          %s1627 = sshll.u32 %s1618, 4
          %s1628 = int_to_ptr.vmem [resolvable:$true] %s1627
          %s1629 = sshll.u32 %s1626, 4
          %s1630 = int_to_ptr.hbm [resolvable:$true] %s1629
          %1635 = dma.vmem_to_hbm [thread:$0]  %s1628, 256, %s1630, %s1615, 128, 128, 8
        $region60: #{tpu_custom_call.1} parent=35 // pred_fallthru
          _
        // Predicated region
        $region61: #{tpu_custom_call.1} parent=35 // pred_check
          %p1636 = pneg %p154
        $region62: #{tpu_custom_call.1} parent=35 // pred_check_branch
          %1638 = sbr.rel (%p1636) target = $region64
        $region63: #{tpu_custom_call.1} parent=35 // pred_region
          %1640 = vsyncadd [#allocation11], 0
          %s1642 = sshll.u32 [#allocation10], 4
          %s1643 = int_to_ptr.vmem [resolvable:$true] %s1642
          %s1644 = sshll.u32 %s5, 4
          %s1645 = int_to_ptr.hbm [resolvable:$true] %s1644
          %1647 = dma.vmem_to_hbm [thread:$0]  %s1643, 16, %s1645, [#allocation11]
        $region64: #{tpu_custom_call.1} parent=35 // pred_fallthru
          _
        // Predicated region
        $region65: #{tpu_custom_call.1} parent=35 // pred_check
          %p1648 = pneg %p175
        $region66: #{tpu_custom_call.1} parent=35 // pred_check_branch
          %1650 = sbr.rel (%p1648) target = $region68
        $region67: #{tpu_custom_call.1} parent=35 // pred_region
          %1652 = vsyncadd [#allocation11], 0
          %s1654 = sshll.u32 [#allocation12], 4
          %s1655 = int_to_ptr.vmem [resolvable:$true] %s1654
          %s1656 = sshll.u32 %s6, 4
          %s1657 = int_to_ptr.hbm [resolvable:$true] %s1656
          %1659 = dma.vmem_to_hbm [thread:$0]  %s1655, 16, %s1657, [#allocation11]
        $region68: #{tpu_custom_call.1} parent=35 // pred_fallthru
          _
        // Predicated region
        $region69: #{tpu_custom_call.1} parent=35 // pred_check
          %p1660 = pneg %p154
        $region70: #{tpu_custom_call.1} parent=35 // pred_check_branch
          %1662 = sbr.rel (%p1660) target = $region72
        $region71: #{tpu_custom_call.1} parent=35 // pred_region
          %1664 = dma.done [#allocation11], 16
        $region72: #{tpu_custom_call.1} parent=35 // pred_fallthru
          _
        // Predicated region
        $region73: #{tpu_custom_call.1} parent=35 // pred_check
          %p1665 = pneg %p175
        $region74: #{tpu_custom_call.1} parent=35 // pred_check_branch
          %1667 = sbr.rel (%p1665) target = $region76
        $region75: #{tpu_custom_call.1} parent=35 // pred_region
          %1669 = dma.done [#allocation11], 16
        $region76: #{tpu_custom_call.1} parent=35 // pred_fallthru
          _
      $region36: #{tpu_custom_call.1} parent=5 // pred_fallthru
        _
      %p1670 = scmp.le.s32.totalorder 2, %s21
      // Predicated region
      $region77: #{tpu_custom_call.1} parent=5 // pred_check
        %p1671 = pneg %p1670
      $region78: #{tpu_custom_call.1} parent=5 // pred_check_branch
        %1673 = sbr.rel (%p1671) target = $region80
      $region79: #{tpu_custom_call.1} parent=5 // pred_region
        %s1674 = ssub.s32 %s21, 2
        // Predicated region
        $region81: #{tpu_custom_call.1} parent=79 // pred_check
          %p1675 = pneg %p139
        $region82: #{tpu_custom_call.1} parent=79 // pred_check_branch
          %1677 = sbr.rel (%p1675) target = $region84
        $region83: #{tpu_custom_call.1} parent=79 // pred_region
          %s1678 = sand.u32 %s124, 1
          %s1679 = scalar_lea.sflag [#allocation5], %s1678
          %s1680 = sand.u32 %s124, 1
          %s1681 = smul.addr %s1680, 16
          %s1682 = scalar_lea.vmem [#allocation9], %s1681
          %1684 = dma.done %s1679, 256
        $region84: #{tpu_custom_call.1} parent=79 // pred_fallthru
          _
      $region80: #{tpu_custom_call.1} parent=5 // pred_fallthru
        _
    $region6: #{tpu_custom_call.1} parent=1 // loop_footer
      %s25 = sadd.s32 1, %s21
    $region7: #{tpu_custom_call.1} parent=1 // loop_footer_branch
      %20 = sbr.rel target = $region3
    $region8: #{tpu_custom_call.1} parent=1 // loop_exit
      _
    %1685 = vsyncpa [#allocation4], 1
    %s1686 = scalar_lea.sflag [#allocation4], 1
    %1687 = vsyncpa %s1686, 1
    %1688 = vsyncpa [#allocation7], 1
    %1689 = vsyncpa [#allocation5], 1
    %s1690 = scalar_lea.sflag [#allocation5], 1
    %1691 = vsyncpa %s1690, 1
    %1692 = vsyncpa [#allocation11], 1

</llo_original>
